<compile_context>
chip_gen: v7x
topology: tpu7x:2x2x1
jax: 0.10.0
libtpu: 0.0.40
codegen_flags: <defaults>
</compile_context>

<pallas_src>
import numpy as np
import jax
import jax.numpy as jnp
from jax.experimental import pallas as pl
from jax.experimental.pallas import tpu as pltpu

# ----- small synthetic config (opt) -----
HIDDEN = 32            # config.hidden_size (logical)
SEN_LEN = 8            # opt.sen_len
DES_LEN = 8            # label-description length
CLABEL_NB = 4          # opt.clabel_nb (!= 12 -> nf_fc outputs clabel_nb)
NUM_DES = CLABEL_NB + 1    # des row 0 = "F" label description, rows 1: = NF labels
VOCAB = 64
BATCH = 2

PAD = 128              # lane-dense padded width (hidden, FC hidden, logits)
LN_EPS = 1e-12         # BERT-style LayerNorm eps (torch nn.LayerNorm default is 1e-5)
COS_EPS_SQ = 1e-12     # per-vector clamp; equiv. to CosineSimilarity(eps=1e-6)
NEG = -1e30            # softmax mask value

N_DES_TOK = NUM_DES * DES_LEN          # 40 description tokens
N_TXT_TOK = BATCH * SEN_LEN            # 16 text tokens
CLS_OFF = N_DES_TOK + N_TXT_TOK        # 56 start of duplicated CLS token ids
N_TOK = CLS_OFF + NUM_DES              # 61
N_TOK_PAD = 64                         # padded to a sublane-tile multiple

# rows of the stacked (8,128) bias / LayerNorm-parameter input
V_POOL_B, V_G_PAR, V_B_PAR, V_G_NF, V_B_NF, V_PB1, V_PB2, V_NFB = range(8)
# slices of the stacked (4,128,128) weight input
W_POOL, W_P1, W_P2, W_NF = range(4)
# slices of the stacked (2,128,128) embedding input
E_DES, E_TXT = range(2)


# ============================ fused Pallas kernel ============================

def _fhmn_fused_kernel(ids_ref, emb_ref, pos_ref, w_ref, vec_ref, out_ref):
    f32 = jnp.float32

    def vrow(k):                       # one (1,128) bias / LN row of the vec stack
        return vec_ref[k:k + 1, :]

    pos_des = pos_ref[0:DES_LEN, :]                          # (8,128)
    pos_txt = pos_ref[DES_LEN:DES_LEN + SEN_LEN, :]          # (8,128)

    # ---- synthetic token encoders: one-hot(ids) @ embedding == MXU gather ----
    ids = ids_ref[...]                                       # (64,1) int32
    onehot = (ids == jax.lax.broadcasted_iota(jnp.int32, (N_TOK_PAD, PAD), 1)
              ).astype(f32)                                  # (64,128)
    des_tok = jnp.dot(onehot[0:N_DES_TOK], emb_ref[E_DES],
                      preferred_element_type=f32)            # (40,128)
    txt_tok = jnp.dot(onehot[N_DES_TOK:CLS_OFF], emb_ref[E_TXT],
                      preferred_element_type=f32)            # (16,128)
    cls_tok = jnp.dot(onehot[CLS_OFF:CLS_OFF + NUM_DES], emb_ref[E_DES],
                      preferred_element_type=f32)            # (5,128)

    a = (des_tok.reshape(NUM_DES, DES_LEN, PAD) + pos_des[None]
         ).reshape(N_DES_TOK, PAD)                           # per-token des embeddings
    fact_all = (txt_tok.reshape(BATCH, SEN_LEN, PAD) + pos_txt[None]
                ).reshape(N_TXT_TOK, PAD)                    # (B*S,128) text tokens
    des_cls = cls_tok + pos_des[0:1, :]                      # (5,128) CLS rows

    # ---- description pooler (tanh) ----
    pooled = jnp.tanh(jnp.dot(des_cls, w_ref[W_POOL], preferred_element_type=f32)
                      + vrow(V_POOL_B))                      # (5,128)

    # ---- F_HMN.cal(): cosine attention + group mean, NF and F branches fused ----
    a_n = a * jax.lax.rsqrt(
        jnp.maximum(jnp.sum(a * a, axis=-1, keepdims=True), COS_EPS_SQ))
    p_n = pooled * jax.lax.rsqrt(
        jnp.maximum(jnp.sum(pooled * pooled, axis=-1, keepdims=True), COS_EPS_SQ))
    cos = jax.lax.dot_general(a_n, p_n, (((1,), (1,)), ((), ())),
                              preferred_element_type=f32)    # (40,5) des order [F,NF..]
    # rows 0..L-1 belong to the F label (mean over col 0); NF rows mean over cols 1:.
    col_f = cos[:, 0:1]
    mean_nf = (jnp.sum(cos, axis=-1, keepdims=True) - col_f) * (1.0 / (NUM_DES - 1))
    row_id = jax.lax.broadcasted_iota(jnp.int32, (N_DES_TOK, 1), 0)
    father = a * jnp.where(row_id < DES_LEN, col_f, mean_nf)

    # per-label max over tokens: one reshape + one sublane reduce (des order [F,NF..])
    maxed = jnp.max(father.reshape(NUM_DES, DES_LEN, PAD), axis=1)   # (5,128)
    # Reference order is [NF1..NF4,F] and coatt_nf attends over label_des[1:] ==
    # {NF2,NF3,NF4,F}.  All downstream use (softmax over labels, weighted sums, label
    # means) is permutation invariant, so instead of reordering we keep des order and
    # MASK OUT label index 1 (= NF1) for the coatt_nf branch.

    def layer_norm(x, g, b):
        mu = jnp.sum(x, axis=-1, keepdims=True) * (1.0 / HIDDEN)
        var = jnp.maximum(
            jnp.sum(x * x, axis=-1, keepdims=True) * (1.0 / HIDDEN) - mu * mu, 0.0)
        return (x - mu) * jax.lax.rsqrt(var + LN_EPS) * g + b

    g_par, b_par = vrow(V_G_PAR), vrow(V_B_PAR)
    g_nf, b_nf = vrow(V_G_NF), vrow(V_B_NF)
    inv_scale = 1.0 / float(np.sqrt(HIDDEN))

    # ---- RSAN, batched over BATCH; parent and coatt_nf share the score matmul ----
    s_fl = jax.lax.dot_general(fact_all, maxed, (((1,), (1,)), ((), ())),
                               preferred_element_type=f32) * inv_scale   # (16,5)
    e1 = jnp.exp(s_fl - jnp.max(s_fl, axis=-1, keepdims=True))
    p1_par = e1 * pl.reciprocal(jnp.sum(e1, axis=-1, keepdims=True), approx=True)
    col_mask = jax.lax.broadcasted_iota(jnp.int32, (1, NUM_DES), 1) != 1
    s_nf = jnp.where(col_mask, s_fl, NEG)
    e2 = jnp.exp(s_nf - jnp.max(s_nf, axis=-1, keepdims=True))
    p1_nf = e2 * pl.reciprocal(jnp.sum(e2, axis=-1, keepdims=True), approx=True)

    fact_par = fact_all + jnp.dot(p1_par, maxed, preferred_element_type=f32)
    fact_nf = fact_all + jnp.dot(p1_nf, maxed, preferred_element_type=f32)
    pf = jnp.sum(layer_norm(fact_par, g_par, b_par).reshape(BATCH, SEN_LEN, PAD),
                 axis=1) * (1.0 / SEN_LEN)                   # (B,128)
    cf = jnp.sum(layer_norm(fact_nf, g_nf, b_nf).reshape(BATCH, SEN_LEN, PAD),
                 axis=1) * (1.0 / SEN_LEN)

    # labels attend over the facts: label_aoa rows are shared between both branches
    # (only the LayerNorm params and the pooled label subset differ).
    lab_mask = (jax.lax.broadcasted_iota(jnp.int32, (NUM_DES, 1), 0) != 1).astype(f32)
    plab_rows, clab_rows = [], []
    for bi in range(BATCH):
        fact_b = fact_all[bi * SEN_LEN:(bi + 1) * SEN_LEN]                  # (8,128)
        s_lf = jax.lax.dot_general(maxed, fact_b, (((1,), (1,)), ((), ())),
                                   preferred_element_type=f32) * inv_scale  # (5,8)
        e3 = jnp.exp(s_lf - jnp.max(s_lf, axis=-1, keepdims=True))
        p2 = e3 * pl.reciprocal(jnp.sum(e3, axis=-1, keepdims=True), approx=True)
        label_aoa = maxed + jnp.dot(p2, fact_b, preferred_element_type=f32)  # (5,128)
        plab_rows.append(jnp.sum(layer_norm(label_aoa, g_par, b_par), axis=0,
                                 keepdims=True) * (1.0 / NUM_DES))
        clab_rows.append(jnp.sum(layer_norm(label_aoa, g_nf, b_nf) * lab_mask, axis=0,
                                 keepdims=True) * (1.0 / (NUM_DES - 1)))
    plab = jnp.concatenate(plab_rows, axis=0)   # (B,128) label half of output_feature
    clab = jnp.concatenate(clab_rows, axis=0)

    # ---- FC heads: pack [fact | label] halves into one lane-dense vreg (XLU roll) ----
    feat_par = pf + pltpu.roll(plab, shift=HIDDEN, axis=1)
    feat_nf = cf + pltpu.roll(clab, shift=HIDDEN, axis=1)

    h1 = jnp.maximum(
        jnp.dot(feat_par, w_ref[W_P1], preferred_element_type=f32) + vrow(V_PB1), 0.0)
    out_ref[0] = jnp.dot(h1, w_ref[W_P2], preferred_element_type=f32) + vrow(V_PB2)
    out_ref[1] = jnp.dot(feat_nf, w_ref[W_NF], preferred_element_type=f32) + vrow(V_NFB)


# ============================ parameter packing ============================

def _pad2(x, rows=PAD, cols=PAD):
    x = jnp.asarray(x, jnp.float32)
    return jnp.pad(x, ((0, rows - x.shape[0]), (0, cols - x.shape[1])))


def _padv(x):
    x = jnp.asarray(x, jnp.float32)
    return jnp.pad(x, (0, PAD - x.shape[0]))


def init_params(key):
    """Raw parameters + lane-dense packing done ONCE (nothing is padded per call)."""
    ks = jax.random.split(key, 8)

    def nrm(k, shape, scale=0.02):
        return scale * jax.random.normal(k, shape, dtype=jnp.float32)

    emb_des = nrm(ks[0], (VOCAB, HIDDEN))
    pos_des = nrm(ks[1], (max(SEN_LEN, DES_LEN), HIDDEN))
    pool_w = nrm(ks[2], (HIDDEN, HIDDEN))
    pool_b = jnp.zeros((HIDDEN,), jnp.float32)
    emb_txt = nrm(ks[3], (VOCAB, HIDDEN))
    pos_txt = nrm(ks[4], (max(SEN_LEN, DES_LEN), HIDDEN))
    # LayerNorm params of RSANModel and coatt_nf (separate module instances)
    g_par = jnp.ones((HIDDEN,), jnp.float32)
    b_par = jnp.zeros((HIDDEN,), jnp.float32)
    g_nf = jnp.ones((HIDDEN,), jnp.float32)
    b_nf = jnp.zeros((HIDDEN,), jnp.float32)
    # parent_fc: FCLayer(2H, 2, type='deep') ~= Linear(2H,2H)->ReLU->Linear(2H,2)
    w1 = nrm(ks[5], (2 * HIDDEN, 2 * HIDDEN))
    b1 = jnp.zeros((2 * HIDDEN,), jnp.float32)
    w2 = nrm(ks[6], (2 * HIDDEN, 2))
    b2 = jnp.zeros((2,), jnp.float32)
    # nf_fc: FCLayer(2H, clabel_nb)
    nf_w = nrm(ks[7], (2 * HIDDEN, CLABEL_NB))
    nf_b = jnp.zeros((CLABEL_NB,), jnp.float32)

    def pad_cat_fc(w):
        # rows 0:2H hold the real [fact; label] weights; the label-half rows are
        # duplicated at PAD-HIDDEN: so the lane-rolled label features hit valid
        # weights under either rotation-direction convention of pltpu.roll.
        wp = _pad2(w)
        return wp.at[PAD - HIDDEN:PAD, :].set(wp[HIDDEN:2 * HIDDEN, :])

    return {
        "emb": jnp.stack([_pad2(emb_des), _pad2(emb_txt)]),                 # (2,128,128)
        "pos": jnp.concatenate([_pad2(pos_des[:DES_LEN], rows=DES_LEN),
                                _pad2(pos_txt[:SEN_LEN], rows=SEN_LEN)],
                               axis=0),                                     # (16,128)
        "w": jnp.stack([_pad2(pool_w), pad_cat_fc(w1),
                        _pad2(w2), pad_cat_fc(nf_w)]),                      # (4,128,128)
        "vec": jnp.stack([_padv(pool_b), _padv(g_par), _padv(b_par), _padv(g_nf),
                          _padv(b_nf), _padv(b1), _padv(b2), _padv(nf_b)]), # (8,128)
    }


# ============================ device forward ============================

@jax.jit
def _forward_core(text, child_label_des, params):
    """Everything on-device in ONE fused pallas_call (encoders included)."""
    ids = jnp.concatenate([child_label_des.reshape(-1),
                           text.reshape(-1),
                           child_label_des[:, 0]]).astype(jnp.int32)
    ids = jnp.pad(ids, (0, N_TOK_PAD - N_TOK)).reshape(N_TOK_PAD, 1)
    out = pl.pallas_call(
        _fhmn_fused_kernel,
        out_shape=jax.ShapeDtypeStruct((2, BATCH, PAD), jnp.float32),
    )(ids, params["emb"], params["pos"], params["w"], params["vec"])
    return out[0, :, :2], out[1, :, :CLABEL_NB]


# ============================ F_HMN.forward ============================

def f_hmn_forward(text, child_label_des, p_label, params, mode="train"):
    # child logits are batch-row independent, so computing them for every row inside
    # the fused kernel and selecting afterwards equals running coatt_nf on the subset.
    parent_prob, child_all = _forward_core(text, child_label_des, params)

    if mode == "train":
        # host-side index bookkeeping exactly as in the reference module; p_label is
        # host data (numpy), so this does not force a device round trip.
        p_np = np.asarray(p_label)
        b_f_index = [i for i in range(p_np.shape[0]) if p_np[i, 1] == 1.0]
        b_nf_index = [i for i in range(p_np.shape[0]) if p_np[i, 1] != 1.0]
        child_prob = []
        if len(b_nf_index) != 0:
            idx = jnp.asarray(b_nf_index, dtype=jnp.int32)
            child_prob.append(child_all[idx])
        else:
            child_prob.append([])
        return parent_prob, child_prob, b_nf_index, b_f_index

    # eval mode: one host read of the already-computed sigmoids (the branch on
    # sigmoid(parent)[0] is part of the reference semantics).
    sig_parent = jax.nn.sigmoid(parent_prob)
    sig_child = jax.nn.sigmoid(child_all)
    sp = np.asarray(sig_parent)
    if sp[0, 0] > sp[0, 1]:
        return sig_parent, sig_child
    return sig_parent, 0


# ============================ main ============================

if __name__ == "__main__":
    key = jax.random.PRNGKey(0)
    k_text, k_des, k_param = jax.random.split(key, 3)

    text = jax.random.randint(k_text, (BATCH, SEN_LEN), 0, VOCAB, dtype=jnp.int32)
    child_label_des = jax.random.randint(k_des, (NUM_DES, DES_LEN), 0, VOCAB,
                                         dtype=jnp.int32)
    # sample 0 belongs to the "F" parent class, sample 1 to "NF"  (host numpy -> no sync)
    p_label = np.array([[0.0, 1.0], [1.0, 0.0]], dtype=np.float32)

    params = init_params(k_param)

    parent_prob, child_prob, b_nf_index, b_f_index = f_hmn_forward(
        text, child_label_des, p_label, params, mode="train")

    jax.block_until_ready(parent_prob)
    if len(child_prob) and not isinstance(child_prob[0], list):
        jax.block_until_ready(child_prob[0])

    print("KERNEL_OK")
</pallas_src>

<mosaic_0001>
module attributes {stable_mosaic.version = 11 : i64} {
  func.func @_fhmn_fused_kernel(%arg0: memref<64x1xi32, #tpu.memory_space<vmem>>, %arg1: memref<2x128x128xf32, #tpu.memory_space<vmem>>, %arg2: memref<16x128xf32, #tpu.memory_space<vmem>>, %arg3: memref<4x128x128xf32, #tpu.memory_space<vmem>>, %arg4: memref<8x128xf32, #tpu.memory_space<vmem>>, %arg5: memref<2x2x128xf32, #tpu.memory_space<vmem>>) attributes {dimension_semantics = [], scalar_prefetch = 0 : i64, scratch_operands = 0 : i64, tpu.core_type = #tpu.core_type<tc>} {
    %c0 = arith.constant 0 : index
    %c0_0 = arith.constant 0 : index
    %0 = vector.load %arg2[%c0, %c0_0] : memref<16x128xf32, #tpu.memory_space<vmem>>, vector<8x128xf32>
    %c8 = arith.constant 8 : index
    %c0_1 = arith.constant 0 : index
    %1 = vector.load %arg2[%c8, %c0_1] : memref<16x128xf32, #tpu.memory_space<vmem>>, vector<8x128xf32>
    %c0_2 = arith.constant 0 : index
    %c0_3 = arith.constant 0 : index
    %2 = vector.load %arg0[%c0_2, %c0_3] : memref<64x1xi32, #tpu.memory_space<vmem>>, vector<64x1xi32>
    %3 = tpu.iota {dimensions = array<i32: 1>} : vector<64x128xi32>
    %4 = vector.broadcast %2 : vector<64x1xi32> to vector<64x128xi32>
    %5 = arith.cmpi eq, %4, %3 : vector<64x128xi32>
    %6 = arith.extui %5 : vector<64x128xi1> to vector<64x128xi32>
    %7 = arith.sitofp %6 : vector<64x128xi32> to vector<64x128xf32>
    %8 = vector.extract_strided_slice %7 {offsets = [0, 0], sizes = [40, 128], strides = [1, 1]} : vector<64x128xf32> to vector<40x128xf32>
    %c0_4 = arith.constant 0 : index
    %c0_5 = arith.constant 0 : index
    %c0_6 = arith.constant 0 : index
    %9 = vector.load %arg1[%c0_4, %c0_5, %c0_6] : memref<2x128x128xf32, #tpu.memory_space<vmem>>, vector<1x128x128xf32>
    %10 = vector.shape_cast %9 : vector<1x128x128xf32> to vector<128x128xf32>
    %cst = arith.constant dense<0.000000e+00> : vector<40x128xf32>
    %11 = tpu.matmul %8, %10, %cst {dimension_numbers = #tpu.dot_dimension_numbers<[1], [0], [0], [1], [0, 0, 1, 1], [], []>} : vector<40x128xf32>, vector<128x128xf32>, vector<40x128xf32> -> vector<40x128xf32>
    %12 = vector.extract_strided_slice %7 {offsets = [40, 0], sizes = [16, 128], strides = [1, 1]} : vector<64x128xf32> to vector<16x128xf32>
    %c1 = arith.constant 1 : index
    %c0_7 = arith.constant 0 : index
    %c0_8 = arith.constant 0 : index
    %13 = vector.load %arg1[%c1, %c0_7, %c0_8] : memref<2x128x128xf32, #tpu.memory_space<vmem>>, vector<1x128x128xf32>
    %14 = vector.shape_cast %13 : vector<1x128x128xf32> to vector<128x128xf32>
    %cst_9 = arith.constant dense<0.000000e+00> : vector<16x128xf32>
    %15 = tpu.matmul %12, %14, %cst_9 {dimension_numbers = #tpu.dot_dimension_numbers<[1], [0], [0], [1], [0, 0, 1, 1], [], []>} : vector<16x128xf32>, vector<128x128xf32>, vector<16x128xf32> -> vector<16x128xf32>
    %16 = vector.extract_strided_slice %7 {offsets = [56, 0], sizes = [5, 128], strides = [1, 1]} : vector<64x128xf32> to vector<5x128xf32>
    %c0_10 = arith.constant 0 : index
    %c0_11 = arith.constant 0 : index
    %c0_12 = arith.constant 0 : index
    %17 = vector.load %arg1[%c0_10, %c0_11, %c0_12] : memref<2x128x128xf32, #tpu.memory_space<vmem>>, vector<1x128x128xf32>
    %18 = vector.shape_cast %17 : vector<1x128x128xf32> to vector<128x128xf32>
    %cst_13 = arith.constant dense<0.000000e+00> : vector<5x128xf32>
    %19 = tpu.matmul %16, %18, %cst_13 {dimension_numbers = #tpu.dot_dimension_numbers<[1], [0], [0], [1], [0, 0, 1, 1], [], []>} : vector<5x128xf32>, vector<128x128xf32>, vector<5x128xf32> -> vector<5x128xf32>
    %20 = vector.shape_cast %11 : vector<40x128xf32> to vector<5x8x128xf32>
    %21 = vector.shape_cast %0 : vector<8x128xf32> to vector<1x8x128xf32>
    %22 = vector.broadcast %21 : vector<1x8x128xf32> to vector<5x8x128xf32>
    %23 = arith.addf %20, %22 : vector<5x8x128xf32>
    %24 = vector.shape_cast %23 : vector<5x8x128xf32> to vector<40x128xf32>
    %25 = vector.shape_cast %15 : vector<16x128xf32> to vector<2x8x128xf32>
    %26 = vector.shape_cast %1 : vector<8x128xf32> to vector<1x8x128xf32>
    %27 = vector.broadcast %26 : vector<1x8x128xf32> to vector<2x8x128xf32>
    %28 = arith.addf %25, %27 : vector<2x8x128xf32>
    %29 = vector.shape_cast %28 : vector<2x8x128xf32> to vector<16x128xf32>
    %30 = vector.extract_strided_slice %0 {offsets = [0, 0], sizes = [1, 128], strides = [1, 1]} : vector<8x128xf32> to vector<1x128xf32>
    %31 = vector.broadcast %30 : vector<1x128xf32> to vector<5x128xf32>
    %32 = arith.addf %19, %31 : vector<5x128xf32>
    %c0_14 = arith.constant 0 : index
    %c0_15 = arith.constant 0 : index
    %c0_16 = arith.constant 0 : index
    %33 = vector.load %arg3[%c0_14, %c0_15, %c0_16] : memref<4x128x128xf32, #tpu.memory_space<vmem>>, vector<1x128x128xf32>
    %34 = vector.shape_cast %33 : vector<1x128x128xf32> to vector<128x128xf32>
    %cst_17 = arith.constant dense<0.000000e+00> : vector<5x128xf32>
    %35 = tpu.matmul %32, %34, %cst_17 {dimension_numbers = #tpu.dot_dimension_numbers<[1], [0], [0], [1], [0, 0, 1, 1], [], []>} : vector<5x128xf32>, vector<128x128xf32>, vector<5x128xf32> -> vector<5x128xf32>
    %c0_18 = arith.constant 0 : index
    %c0_19 = arith.constant 0 : index
    %36 = vector.load %arg4[%c0_18, %c0_19] : memref<8x128xf32, #tpu.memory_space<vmem>>, vector<1x128xf32>
    %37 = vector.broadcast %36 : vector<1x128xf32> to vector<5x128xf32>
    %38 = arith.addf %35, %37 : vector<5x128xf32>
    %39 = math.tanh %38 : vector<5x128xf32>
    %40 = arith.mulf %24, %24 : vector<40x128xf32>
    %cst_20 = arith.constant dense<0.000000e+00> : vector<40xf32>
    %41 = vector.multi_reduction <add>, %40, %cst_20 [1] : vector<40x128xf32> to vector<40xf32>
    %42 = vector.shape_cast %41 : vector<40xf32> to vector<40x1xf32>
    %cst_21 = arith.constant 9.99999996E-13 : f32
    %43 = vector.broadcast %cst_21 : f32 to vector<40x1xf32>
    %44 = arith.maximumf %42, %43 : vector<40x1xf32>
    %45 = math.rsqrt %44 : vector<40x1xf32>
    %46 = vector.broadcast %45 : vector<40x1xf32> to vector<40x128xf32>
    %47 = arith.mulf %24, %46 : vector<40x128xf32>
    %48 = arith.mulf %39, %39 : vector<5x128xf32>
    %cst_22 = arith.constant dense<0.000000e+00> : vector<5xf32>
    %49 = vector.multi_reduction <add>, %48, %cst_22 [1] : vector<5x128xf32> to vector<5xf32>
    %50 = vector.shape_cast %49 : vector<5xf32> to vector<5x1xf32>
    %cst_23 = arith.constant 9.99999996E-13 : f32
    %51 = vector.broadcast %cst_23 : f32 to vector<5x1xf32>
    %52 = arith.maximumf %50, %51 : vector<5x1xf32>
    %53 = math.rsqrt %52 : vector<5x1xf32>
    %54 = vector.broadcast %53 : vector<5x1xf32> to vector<5x128xf32>
    %55 = arith.mulf %39, %54 : vector<5x128xf32>
    %cst_24 = arith.constant dense<0.000000e+00> : vector<40x5xf32>
    %56 = tpu.matmul %47, %55, %cst_24 {dimension_numbers = #tpu.dot_dimension_numbers<[1], [1], [0], [0], [0, 0, 1, 0], [], []>} : vector<40x128xf32>, vector<5x128xf32>, vector<40x5xf32> -> vector<40x5xf32>
    %57 = vector.extract_strided_slice %56 {offsets = [0, 0], sizes = [40, 1], strides = [1, 1]} : vector<40x5xf32> to vector<40x1xf32>
    %cst_25 = arith.constant dense<0.000000e+00> : vector<40xf32>
    %58 = vector.multi_reduction <add>, %56, %cst_25 [1] : vector<40x5xf32> to vector<40xf32>
    %59 = vector.shape_cast %58 : vector<40xf32> to vector<40x1xf32>
    %60 = arith.subf %59, %57 : vector<40x1xf32>
    %cst_26 = arith.constant 2.500000e-01 : f32
    %61 = vector.broadcast %cst_26 : f32 to vector<40x1xf32>
    %62 = arith.mulf %60, %61 : vector<40x1xf32>
    %63 = tpu.iota {dimensions = array<i32: 0>} : vector<40x1xi32>
    %c8_i32 = arith.constant 8 : i32
    %64 = vector.broadcast %c8_i32 : i32 to vector<40x1xi32>
    %65 = arith.cmpi slt, %63, %64 : vector<40x1xi32>
    %66 = arith.select %65, %57, %62 : vector<40x1xi1>, vector<40x1xf32>
    %67 = vector.broadcast %66 : vector<40x1xf32> to vector<40x128xf32>
    %68 = arith.mulf %24, %67 : vector<40x128xf32>
    %69 = vector.shape_cast %68 : vector<40x128xf32> to vector<5x8x128xf32>
    %cst_27 = arith.constant dense<0xFF800000> : vector<5x128xf32>
    %70 = vector.multi_reduction <maximumf>, %69, %cst_27 [1] : vector<5x8x128xf32> to vector<5x128xf32>
    %c1_28 = arith.constant 1 : index
    %c0_29 = arith.constant 0 : index
    %71 = vector.load %arg4[%c1_28, %c0_29] : memref<8x128xf32, #tpu.memory_space<vmem>>, vector<1x128xf32>
    %c2 = arith.constant 2 : index
    %c0_30 = arith.constant 0 : index
    %72 = vector.load %arg4[%c2, %c0_30] : memref<8x128xf32, #tpu.memory_space<vmem>>, vector<1x128xf32>
    %c3 = arith.constant 3 : index
    %c0_31 = arith.constant 0 : index
    %73 = vector.load %arg4[%c3, %c0_31] : memref<8x128xf32, #tpu.memory_space<vmem>>, vector<1x128xf32>
    %c4 = arith.constant 4 : index
    %c0_32 = arith.constant 0 : index
    %74 = vector.load %arg4[%c4, %c0_32] : memref<8x128xf32, #tpu.memory_space<vmem>>, vector<1x128xf32>
    %cst_33 = arith.constant dense<0.000000e+00> : vector<16x5xf32>
    %75 = tpu.matmul %29, %70, %cst_33 {dimension_numbers = #tpu.dot_dimension_numbers<[1], [1], [0], [0], [0, 0, 1, 0], [], []>} : vector<16x128xf32>, vector<5x128xf32>, vector<16x5xf32> -> vector<16x5xf32>
    %cst_34 = arith.constant 0.176776692 : f32
    %76 = vector.broadcast %cst_34 : f32 to vector<16x5xf32>
    %77 = arith.mulf %75, %76 : vector<16x5xf32>
    %cst_35 = arith.constant dense<0xFF800000> : vector<16xf32>
    %78 = vector.multi_reduction <maximumf>, %77, %cst_35 [1] : vector<16x5xf32> to vector<16xf32>
    %79 = vector.shape_cast %78 : vector<16xf32> to vector<16x1xf32>
    %80 = vector.broadcast %79 : vector<16x1xf32> to vector<16x5xf32>
    %81 = arith.subf %77, %80 : vector<16x5xf32>
    %82 = math.exp %81 : vector<16x5xf32>
    %cst_36 = arith.constant dense<0.000000e+00> : vector<16xf32>
    %83 = vector.multi_reduction <add>, %82, %cst_36 [1] : vector<16x5xf32> to vector<16xf32>
    %84 = vector.shape_cast %83 : vector<16xf32> to vector<16x1xf32>
    %85 = tpu.reciprocal %84 {approx = true} : vector<16x1xf32> -> vector<16x1xf32>
    %86 = vector.broadcast %85 : vector<16x1xf32> to vector<16x5xf32>
    %87 = arith.mulf %82, %86 : vector<16x5xf32>
    %88 = tpu.iota {dimensions = array<i32: 1>} : vector<1x5xi32>
    %c1_i32 = arith.constant 1 : i32
    %89 = vector.broadcast %c1_i32 : i32 to vector<1x5xi32>
    %90 = arith.cmpi ne, %88, %89 : vector<1x5xi32>
    %cst_37 = arith.constant -1.000000e+30 : f32
    %91 = vector.shape_cast %90 : vector<1x5xi1> to vector<1x5xi1>
    %92 = vector.broadcast %91 : vector<1x5xi1> to vector<16x5xi1>
    %93 = vector.broadcast %cst_37 : f32 to vector<16x5xf32>
    %94 = arith.select %92, %77, %93 : vector<16x5xi1>, vector<16x5xf32>
    %cst_38 = arith.constant dense<0xFF800000> : vector<16xf32>
    %95 = vector.multi_reduction <maximumf>, %94, %cst_38 [1] : vector<16x5xf32> to vector<16xf32>
    %96 = vector.shape_cast %95 : vector<16xf32> to vector<16x1xf32>
    %97 = vector.broadcast %96 : vector<16x1xf32> to vector<16x5xf32>
    %98 = arith.subf %94, %97 : vector<16x5xf32>
    %99 = math.exp %98 : vector<16x5xf32>
    %cst_39 = arith.constant dense<0.000000e+00> : vector<16xf32>
    %100 = vector.multi_reduction <add>, %99, %cst_39 [1] : vector<16x5xf32> to vector<16xf32>
    %101 = vector.shape_cast %100 : vector<16xf32> to vector<16x1xf32>
    %102 = tpu.reciprocal %101 {approx = true} : vector<16x1xf32> -> vector<16x1xf32>
    %103 = vector.broadcast %102 : vector<16x1xf32> to vector<16x5xf32>
    %104 = arith.mulf %99, %103 : vector<16x5xf32>
    %cst_40 = arith.constant dense<0.000000e+00> : vector<16x128xf32>
    %105 = tpu.matmul %87, %70, %cst_40 {dimension_numbers = #tpu.dot_dimension_numbers<[1], [0], [0], [1], [0, 0, 1, 1], [], []>} : vector<16x5xf32>, vector<5x128xf32>, vector<16x128xf32> -> vector<16x128xf32>
    %106 = arith.addf %29, %105 : vector<16x128xf32>
    %cst_41 = arith.constant dense<0.000000e+00> : vector<16x128xf32>
    %107 = tpu.matmul %104, %70, %cst_41 {dimension_numbers = #tpu.dot_dimension_numbers<[1], [0], [0], [1], [0, 0, 1, 1], [], []>} : vector<16x5xf32>, vector<5x128xf32>, vector<16x128xf32> -> vector<16x128xf32>
    %108 = arith.addf %29, %107 : vector<16x128xf32>
    %cst_42 = arith.constant dense<0.000000e+00> : vector<16xf32>
    %109 = vector.multi_reduction <add>, %106, %cst_42 [1] : vector<16x128xf32> to vector<16xf32>
    %110 = vector.shape_cast %109 : vector<16xf32> to vector<16x1xf32>
    %cst_43 = arith.constant 3.125000e-02 : f32
    %111 = vector.broadcast %cst_43 : f32 to vector<16x1xf32>
    %112 = arith.mulf %110, %111 : vector<16x1xf32>
    %113 = arith.mulf %106, %106 : vector<16x128xf32>
    %cst_44 = arith.constant dense<0.000000e+00> : vector<16xf32>
    %114 = vector.multi_reduction <add>, %113, %cst_44 [1] : vector<16x128xf32> to vector<16xf32>
    %115 = vector.shape_cast %114 : vector<16xf32> to vector<16x1xf32>
    %cst_45 = arith.constant 3.125000e-02 : f32
    %116 = vector.broadcast %cst_45 : f32 to vector<16x1xf32>
    %117 = arith.mulf %115, %116 : vector<16x1xf32>
    %118 = arith.mulf %112, %112 : vector<16x1xf32>
    %119 = arith.subf %117, %118 : vector<16x1xf32>
    %cst_46 = arith.constant 0.000000e+00 : f32
    %120 = vector.broadcast %cst_46 : f32 to vector<16x1xf32>
    %121 = arith.maximumf %119, %120 : vector<16x1xf32>
    %122 = vector.broadcast %112 : vector<16x1xf32> to vector<16x128xf32>
    %123 = arith.subf %106, %122 : vector<16x128xf32>
    %cst_47 = arith.constant 9.99999996E-13 : f32
    %124 = vector.broadcast %cst_47 : f32 to vector<16x1xf32>
    %125 = arith.addf %121, %124 : vector<16x1xf32>
    %126 = math.rsqrt %125 : vector<16x1xf32>
    %127 = vector.broadcast %126 : vector<16x1xf32> to vector<16x128xf32>
    %128 = arith.mulf %123, %127 : vector<16x128xf32>
    %129 = vector.broadcast %71 : vector<1x128xf32> to vector<16x128xf32>
    %130 = arith.mulf %128, %129 : vector<16x128xf32>
    %131 = vector.broadcast %72 : vector<1x128xf32> to vector<16x128xf32>
    %132 = arith.addf %130, %131 : vector<16x128xf32>
    %133 = vector.shape_cast %132 : vector<16x128xf32> to vector<2x8x128xf32>
    %cst_48 = arith.constant dense<0.000000e+00> : vector<2x128xf32>
    %134 = vector.multi_reduction <add>, %133, %cst_48 [1] : vector<2x8x128xf32> to vector<2x128xf32>
    %cst_49 = arith.constant 1.250000e-01 : f32
    %135 = vector.broadcast %cst_49 : f32 to vector<2x128xf32>
    %136 = arith.mulf %134, %135 : vector<2x128xf32>
    %cst_50 = arith.constant dense<0.000000e+00> : vector<16xf32>
    %137 = vector.multi_reduction <add>, %108, %cst_50 [1] : vector<16x128xf32> to vector<16xf32>
    %138 = vector.shape_cast %137 : vector<16xf32> to vector<16x1xf32>
    %cst_51 = arith.constant 3.125000e-02 : f32
    %139 = vector.broadcast %cst_51 : f32 to vector<16x1xf32>
    %140 = arith.mulf %138, %139 : vector<16x1xf32>
    %141 = arith.mulf %108, %108 : vector<16x128xf32>
    %cst_52 = arith.constant dense<0.000000e+00> : vector<16xf32>
    %142 = vector.multi_reduction <add>, %141, %cst_52 [1] : vector<16x128xf32> to vector<16xf32>
    %143 = vector.shape_cast %142 : vector<16xf32> to vector<16x1xf32>
    %cst_53 = arith.constant 3.125000e-02 : f32
    %144 = vector.broadcast %cst_53 : f32 to vector<16x1xf32>
    %145 = arith.mulf %143, %144 : vector<16x1xf32>
    %146 = arith.mulf %140, %140 : vector<16x1xf32>
    %147 = arith.subf %145, %146 : vector<16x1xf32>
    %cst_54 = arith.constant 0.000000e+00 : f32
    %148 = vector.broadcast %cst_54 : f32 to vector<16x1xf32>
    %149 = arith.maximumf %147, %148 : vector<16x1xf32>
    %150 = vector.broadcast %140 : vector<16x1xf32> to vector<16x128xf32>
    %151 = arith.subf %108, %150 : vector<16x128xf32>
    %cst_55 = arith.constant 9.99999996E-13 : f32
    %152 = vector.broadcast %cst_55 : f32 to vector<16x1xf32>
    %153 = arith.addf %149, %152 : vector<16x1xf32>
    %154 = math.rsqrt %153 : vector<16x1xf32>
    %155 = vector.broadcast %154 : vector<16x1xf32> to vector<16x128xf32>
    %156 = arith.mulf %151, %155 : vector<16x128xf32>
    %157 = vector.broadcast %73 : vector<1x128xf32> to vector<16x128xf32>
    %158 = arith.mulf %156, %157 : vector<16x128xf32>
    %159 = vector.broadcast %74 : vector<1x128xf32> to vector<16x128xf32>
    %160 = arith.addf %158, %159 : vector<16x128xf32>
    %161 = vector.shape_cast %160 : vector<16x128xf32> to vector<2x8x128xf32>
    %cst_56 = arith.constant dense<0.000000e+00> : vector<2x128xf32>
    %162 = vector.multi_reduction <add>, %161, %cst_56 [1] : vector<2x8x128xf32> to vector<2x128xf32>
    %cst_57 = arith.constant 1.250000e-01 : f32
    %163 = vector.broadcast %cst_57 : f32 to vector<2x128xf32>
    %164 = arith.mulf %162, %163 : vector<2x128xf32>
    %165 = tpu.iota {dimensions = array<i32: 0>} : vector<5x1xi32>
    %c1_i32_58 = arith.constant 1 : i32
    %166 = vector.broadcast %c1_i32_58 : i32 to vector<5x1xi32>
    %167 = arith.cmpi ne, %165, %166 : vector<5x1xi32>
    %168 = arith.extui %167 : vector<5x1xi1> to vector<5x1xi32>
    %169 = arith.sitofp %168 : vector<5x1xi32> to vector<5x1xf32>
    %170 = vector.extract_strided_slice %29 {offsets = [0, 0], sizes = [8, 128], strides = [1, 1]} : vector<16x128xf32> to vector<8x128xf32>
    %cst_59 = arith.constant dense<0.000000e+00> : vector<5x8xf32>
    %171 = tpu.matmul %70, %170, %cst_59 {dimension_numbers = #tpu.dot_dimension_numbers<[1], [1], [0], [0], [0, 0, 1, 0], [], []>} : vector<5x128xf32>, vector<8x128xf32>, vector<5x8xf32> -> vector<5x8xf32>
    %cst_60 = arith.constant 0.176776692 : f32
    %172 = vector.broadcast %cst_60 : f32 to vector<5x8xf32>
    %173 = arith.mulf %171, %172 : vector<5x8xf32>
    %cst_61 = arith.constant dense<0xFF800000> : vector<5xf32>
    %174 = vector.multi_reduction <maximumf>, %173, %cst_61 [1] : vector<5x8xf32> to vector<5xf32>
    %175 = vector.shape_cast %174 : vector<5xf32> to vector<5x1xf32>
    %176 = vector.broadcast %175 : vector<5x1xf32> to vector<5x8xf32>
    %177 = arith.subf %173, %176 : vector<5x8xf32>
    %178 = math.exp %177 : vector<5x8xf32>
    %cst_62 = arith.constant dense<0.000000e+00> : vector<5xf32>
    %179 = vector.multi_reduction <add>, %178, %cst_62 [1] : vector<5x8xf32> to vector<5xf32>
    %180 = vector.shape_cast %179 : vector<5xf32> to vector<5x1xf32>
    %181 = tpu.reciprocal %180 {approx = true} : vector<5x1xf32> -> vector<5x1xf32>
    %182 = vector.broadcast %181 : vector<5x1xf32> to vector<5x8xf32>
    %183 = arith.mulf %178, %182 : vector<5x8xf32>
    %cst_63 = arith.constant dense<0.000000e+00> : vector<5x128xf32>
    %184 = tpu.matmul %183, %170, %cst_63 {dimension_numbers = #tpu.dot_dimension_numbers<[1], [0], [0], [1], [0, 0, 1, 1], [], []>} : vector<5x8xf32>, vector<8x128xf32>, vector<5x128xf32> -> vector<5x128xf32>
    %185 = arith.addf %70, %184 : vector<5x128xf32>
    %cst_64 = arith.constant dense<0.000000e+00> : vector<5xf32>
    %186 = vector.multi_reduction <add>, %185, %cst_64 [1] : vector<5x128xf32> to vector<5xf32>
    %187 = vector.shape_cast %186 : vector<5xf32> to vector<5x1xf32>
    %cst_65 = arith.constant 3.125000e-02 : f32
    %188 = vector.broadcast %cst_65 : f32 to vector<5x1xf32>
    %189 = arith.mulf %187, %188 : vector<5x1xf32>
    %190 = arith.mulf %185, %185 : vector<5x128xf32>
    %cst_66 = arith.constant dense<0.000000e+00> : vector<5xf32>
    %191 = vector.multi_reduction <add>, %190, %cst_66 [1] : vector<5x128xf32> to vector<5xf32>
    %192 = vector.shape_cast %191 : vector<5xf32> to vector<5x1xf32>
    %cst_67 = arith.constant 3.125000e-02 : f32
    %193 = vector.broadcast %cst_67 : f32 to vector<5x1xf32>
    %194 = arith.mulf %192, %193 : vector<5x1xf32>
    %195 = arith.mulf %189, %189 : vector<5x1xf32>
    %196 = arith.subf %194, %195 : vector<5x1xf32>
    %cst_68 = arith.constant 0.000000e+00 : f32
    %197 = vector.broadcast %cst_68 : f32 to vector<5x1xf32>
    %198 = arith.maximumf %196, %197 : vector<5x1xf32>
    %199 = vector.broadcast %189 : vector<5x1xf32> to vector<5x128xf32>
    %200 = arith.subf %185, %199 : vector<5x128xf32>
    %cst_69 = arith.constant 9.99999996E-13 : f32
    %201 = vector.broadcast %cst_69 : f32 to vector<5x1xf32>
    %202 = arith.addf %198, %201 : vector<5x1xf32>
    %203 = math.rsqrt %202 : vector<5x1xf32>
    %204 = vector.broadcast %203 : vector<5x1xf32> to vector<5x128xf32>
    %205 = arith.mulf %200, %204 : vector<5x128xf32>
    %206 = vector.broadcast %71 : vector<1x128xf32> to vector<5x128xf32>
    %207 = arith.mulf %205, %206 : vector<5x128xf32>
    %208 = vector.broadcast %72 : vector<1x128xf32> to vector<5x128xf32>
    %209 = arith.addf %207, %208 : vector<5x128xf32>
    %cst_70 = arith.constant dense<0.000000e+00> : vector<128xf32>
    %210 = vector.multi_reduction <add>, %209, %cst_70 [0] : vector<5x128xf32> to vector<128xf32>
    %211 = vector.shape_cast %210 : vector<128xf32> to vector<1x128xf32>
    %cst_71 = arith.constant 2.000000e-01 : f32
    %212 = vector.broadcast %cst_71 : f32 to vector<1x128xf32>
    %213 = arith.mulf %211, %212 : vector<1x128xf32>
    %cst_72 = arith.constant dense<0.000000e+00> : vector<5xf32>
    %214 = vector.multi_reduction <add>, %185, %cst_72 [1] : vector<5x128xf32> to vector<5xf32>
    %215 = vector.shape_cast %214 : vector<5xf32> to vector<5x1xf32>
    %cst_73 = arith.constant 3.125000e-02 : f32
    %216 = vector.broadcast %cst_73 : f32 to vector<5x1xf32>
    %217 = arith.mulf %215, %216 : vector<5x1xf32>
    %218 = arith.mulf %185, %185 : vector<5x128xf32>
    %cst_74 = arith.constant dense<0.000000e+00> : vector<5xf32>
    %219 = vector.multi_reduction <add>, %218, %cst_74 [1] : vector<5x128xf32> to vector<5xf32>
    %220 = vector.shape_cast %219 : vector<5xf32> to vector<5x1xf32>
    %cst_75 = arith.constant 3.125000e-02 : f32
    %221 = vector.broadcast %cst_75 : f32 to vector<5x1xf32>
    %222 = arith.mulf %220, %221 : vector<5x1xf32>
    %223 = arith.mulf %217, %217 : vector<5x1xf32>
    %224 = arith.subf %222, %223 : vector<5x1xf32>
    %cst_76 = arith.constant 0.000000e+00 : f32
    %225 = vector.broadcast %cst_76 : f32 to vector<5x1xf32>
    %226 = arith.maximumf %224, %225 : vector<5x1xf32>
    %227 = vector.broadcast %217 : vector<5x1xf32> to vector<5x128xf32>
    %228 = arith.subf %185, %227 : vector<5x128xf32>
    %cst_77 = arith.constant 9.99999996E-13 : f32
    %229 = vector.broadcast %cst_77 : f32 to vector<5x1xf32>
    %230 = arith.addf %226, %229 : vector<5x1xf32>
    %231 = math.rsqrt %230 : vector<5x1xf32>
    %232 = vector.broadcast %231 : vector<5x1xf32> to vector<5x128xf32>
    %233 = arith.mulf %228, %232 : vector<5x128xf32>
    %234 = vector.broadcast %73 : vector<1x128xf32> to vector<5x128xf32>
    %235 = arith.mulf %233, %234 : vector<5x128xf32>
    %236 = vector.broadcast %74 : vector<1x128xf32> to vector<5x128xf32>
    %237 = arith.addf %235, %236 : vector<5x128xf32>
    %238 = vector.broadcast %169 : vector<5x1xf32> to vector<5x128xf32>
    %239 = arith.mulf %237, %238 : vector<5x128xf32>
    %cst_78 = arith.constant dense<0.000000e+00> : vector<128xf32>
    %240 = vector.multi_reduction <add>, %239, %cst_78 [0] : vector<5x128xf32> to vector<128xf32>
    %241 = vector.shape_cast %240 : vector<128xf32> to vector<1x128xf32>
    %cst_79 = arith.constant 2.500000e-01 : f32
    %242 = vector.broadcast %cst_79 : f32 to vector<1x128xf32>
    %243 = arith.mulf %241, %242 : vector<1x128xf32>
    %244 = vector.extract_strided_slice %29 {offsets = [8, 0], sizes = [8, 128], strides = [1, 1]} : vector<16x128xf32> to vector<8x128xf32>
    %cst_80 = arith.constant dense<0.000000e+00> : vector<5x8xf32>
    %245 = tpu.matmul %70, %244, %cst_80 {dimension_numbers = #tpu.dot_dimension_numbers<[1], [1], [0], [0], [0, 0, 1, 0], [], []>} : vector<5x128xf32>, vector<8x128xf32>, vector<5x8xf32> -> vector<5x8xf32>
    %cst_81 = arith.constant 0.176776692 : f32
    %246 = vector.broadcast %cst_81 : f32 to vector<5x8xf32>
    %247 = arith.mulf %245, %246 : vector<5x8xf32>
    %cst_82 = arith.constant dense<0xFF800000> : vector<5xf32>
    %248 = vector.multi_reduction <maximumf>, %247, %cst_82 [1] : vector<5x8xf32> to vector<5xf32>
    %249 = vector.shape_cast %248 : vector<5xf32> to vector<5x1xf32>
    %250 = vector.broadcast %249 : vector<5x1xf32> to vector<5x8xf32>
    %251 = arith.subf %247, %250 : vector<5x8xf32>
    %252 = math.exp %251 : vector<5x8xf32>
    %cst_83 = arith.constant dense<0.000000e+00> : vector<5xf32>
    %253 = vector.multi_reduction <add>, %252, %cst_83 [1] : vector<5x8xf32> to vector<5xf32>
    %254 = vector.shape_cast %253 : vector<5xf32> to vector<5x1xf32>
    %255 = tpu.reciprocal %254 {approx = true} : vector<5x1xf32> -> vector<5x1xf32>
    %256 = vector.broadcast %255 : vector<5x1xf32> to vector<5x8xf32>
    %257 = arith.mulf %252, %256 : vector<5x8xf32>
    %cst_84 = arith.constant dense<0.000000e+00> : vector<5x128xf32>
    %258 = tpu.matmul %257, %244, %cst_84 {dimension_numbers = #tpu.dot_dimension_numbers<[1], [0], [0], [1], [0, 0, 1, 1], [], []>} : vector<5x8xf32>, vector<8x128xf32>, vector<5x128xf32> -> vector<5x128xf32>
    %259 = arith.addf %70, %258 : vector<5x128xf32>
    %cst_85 = arith.constant dense<0.000000e+00> : vector<5xf32>
    %260 = vector.multi_reduction <add>, %259, %cst_85 [1] : vector<5x128xf32> to vector<5xf32>
    %261 = vector.shape_cast %260 : vector<5xf32> to vector<5x1xf32>
    %cst_86 = arith.constant 3.125000e-02 : f32
    %262 = vector.broadcast %cst_86 : f32 to vector<5x1xf32>
    %263 = arith.mulf %261, %262 : vector<5x1xf32>
    %264 = arith.mulf %259, %259 : vector<5x128xf32>
    %cst_87 = arith.constant dense<0.000000e+00> : vector<5xf32>
    %265 = vector.multi_reduction <add>, %264, %cst_87 [1] : vector<5x128xf32> to vector<5xf32>
    %266 = vector.shape_cast %265 : vector<5xf32> to vector<5x1xf32>
    %cst_88 = arith.constant 3.125000e-02 : f32
    %267 = vector.broadcast %cst_88 : f32 to vector<5x1xf32>
    %268 = arith.mulf %266, %267 : vector<5x1xf32>
    %269 = arith.mulf %263, %263 : vector<5x1xf32>
    %270 = arith.subf %268, %269 : vector<5x1xf32>
    %cst_89 = arith.constant 0.000000e+00 : f32
    %271 = vector.broadcast %cst_89 : f32 to vector<5x1xf32>
    %272 = arith.maximumf %270, %271 : vector<5x1xf32>
    %273 = vector.broadcast %263 : vector<5x1xf32> to vector<5x128xf32>
    %274 = arith.subf %259, %273 : vector<5x128xf32>
    %cst_90 = arith.constant 9.99999996E-13 : f32
    %275 = vector.broadcast %cst_90 : f32 to vector<5x1xf32>
    %276 = arith.addf %272, %275 : vector<5x1xf32>
    %277 = math.rsqrt %276 : vector<5x1xf32>
    %278 = vector.broadcast %277 : vector<5x1xf32> to vector<5x128xf32>
    %279 = arith.mulf %274, %278 : vector<5x128xf32>
    %280 = vector.broadcast %71 : vector<1x128xf32> to vector<5x128xf32>
    %281 = arith.mulf %279, %280 : vector<5x128xf32>
    %282 = vector.broadcast %72 : vector<1x128xf32> to vector<5x128xf32>
    %283 = arith.addf %281, %282 : vector<5x128xf32>
    %cst_91 = arith.constant dense<0.000000e+00> : vector<128xf32>
    %284 = vector.multi_reduction <add>, %283, %cst_91 [0] : vector<5x128xf32> to vector<128xf32>
    %285 = vector.shape_cast %284 : vector<128xf32> to vector<1x128xf32>
    %cst_92 = arith.constant 2.000000e-01 : f32
    %286 = vector.broadcast %cst_92 : f32 to vector<1x128xf32>
    %287 = arith.mulf %285, %286 : vector<1x128xf32>
    %cst_93 = arith.constant dense<0.000000e+00> : vector<5xf32>
    %288 = vector.multi_reduction <add>, %259, %cst_93 [1] : vector<5x128xf32> to vector<5xf32>
    %289 = vector.shape_cast %288 : vector<5xf32> to vector<5x1xf32>
    %cst_94 = arith.constant 3.125000e-02 : f32
    %290 = vector.broadcast %cst_94 : f32 to vector<5x1xf32>
    %291 = arith.mulf %289, %290 : vector<5x1xf32>
    %292 = arith.mulf %259, %259 : vector<5x128xf32>
    %cst_95 = arith.constant dense<0.000000e+00> : vector<5xf32>
    %293 = vector.multi_reduction <add>, %292, %cst_95 [1] : vector<5x128xf32> to vector<5xf32>
    %294 = vector.shape_cast %293 : vector<5xf32> to vector<5x1xf32>
    %cst_96 = arith.constant 3.125000e-02 : f32
    %295 = vector.broadcast %cst_96 : f32 to vector<5x1xf32>
    %296 = arith.mulf %294, %295 : vector<5x1xf32>
    %297 = arith.mulf %291, %291 : vector<5x1xf32>
    %298 = arith.subf %296, %297 : vector<5x1xf32>
    %cst_97 = arith.constant 0.000000e+00 : f32
    %299 = vector.broadcast %cst_97 : f32 to vector<5x1xf32>
    %300 = arith.maximumf %298, %299 : vector<5x1xf32>
    %301 = vector.broadcast %291 : vector<5x1xf32> to vector<5x128xf32>
    %302 = arith.subf %259, %301 : vector<5x128xf32>
    %cst_98 = arith.constant 9.99999996E-13 : f32
    %303 = vector.broadcast %cst_98 : f32 to vector<5x1xf32>
    %304 = arith.addf %300, %303 : vector<5x1xf32>
    %305 = math.rsqrt %304 : vector<5x1xf32>
    %306 = vector.broadcast %305 : vector<5x1xf32> to vector<5x128xf32>
    %307 = arith.mulf %302, %306 : vector<5x128xf32>
    %308 = vector.broadcast %73 : vector<1x128xf32> to vector<5x128xf32>
    %309 = arith.mulf %307, %308 : vector<5x128xf32>
    %310 = vector.broadcast %74 : vector<1x128xf32> to vector<5x128xf32>
    %311 = arith.addf %309, %310 : vector<5x128xf32>
    %312 = vector.broadcast %169 : vector<5x1xf32> to vector<5x128xf32>
    %313 = arith.mulf %311, %312 : vector<5x128xf32>
    %cst_99 = arith.constant dense<0.000000e+00> : vector<128xf32>
    %314 = vector.multi_reduction <add>, %313, %cst_99 [0] : vector<5x128xf32> to vector<128xf32>
    %315 = vector.shape_cast %314 : vector<128xf32> to vector<1x128xf32>
    %cst_100 = arith.constant 2.500000e-01 : f32
    %316 = vector.broadcast %cst_100 : f32 to vector<1x128xf32>
    %317 = arith.mulf %315, %316 : vector<1x128xf32>
    %318 = tpu.concatenate %213, %287 in 0 : vector<1x128xf32>, vector<1x128xf32> -> vector<2x128xf32>
    %319 = tpu.concatenate %243, %317 in 0 : vector<1x128xf32>, vector<1x128xf32> -> vector<2x128xf32>
    %c32_i32 = arith.constant 32 : i32
    %320 = tpu.dynamic_rotate %318 by %c32_i32 dim 1 : vector<2x128xf32>, i32 -> vector<2x128xf32>
    %321 = arith.addf %136, %320 : vector<2x128xf32>
    %c32_i32_101 = arith.constant 32 : i32
    %322 = tpu.dynamic_rotate %319 by %c32_i32_101 dim 1 : vector<2x128xf32>, i32 -> vector<2x128xf32>
    %323 = arith.addf %164, %322 : vector<2x128xf32>
    %c1_102 = arith.constant 1 : index
    %c0_103 = arith.constant 0 : index
    %c0_104 = arith.constant 0 : index
    %324 = vector.load %arg3[%c1_102, %c0_103, %c0_104] : memref<4x128x128xf32, #tpu.memory_space<vmem>>, vector<1x128x128xf32>
    %325 = vector.shape_cast %324 : vector<1x128x128xf32> to vector<128x128xf32>
    %cst_105 = arith.constant dense<0.000000e+00> : vector<2x128xf32>
    %326 = tpu.matmul %321, %325, %cst_105 {dimension_numbers = #tpu.dot_dimension_numbers<[1], [0], [0], [1], [0, 0, 1, 1], [], []>} : vector<2x128xf32>, vector<128x128xf32>, vector<2x128xf32> -> vector<2x128xf32>
    %c5 = arith.constant 5 : index
    %c0_106 = arith.constant 0 : index
    %327 = vector.load %arg4[%c5, %c0_106] : memref<8x128xf32, #tpu.memory_space<vmem>>, vector<1x128xf32>
    %328 = vector.broadcast %327 : vector<1x128xf32> to vector<2x128xf32>
    %329 = arith.addf %326, %328 : vector<2x128xf32>
    %cst_107 = arith.constant 0.000000e+00 : f32
    %330 = vector.broadcast %cst_107 : f32 to vector<2x128xf32>
    %331 = arith.maximumf %329, %330 : vector<2x128xf32>
    %c2_108 = arith.constant 2 : index
    %c0_109 = arith.constant 0 : index
    %c0_110 = arith.constant 0 : index
    %332 = vector.load %arg3[%c2_108, %c0_109, %c0_110] : memref<4x128x128xf32, #tpu.memory_space<vmem>>, vector<1x128x128xf32>
    %333 = vector.shape_cast %332 : vector<1x128x128xf32> to vector<128x128xf32>
    %cst_111 = arith.constant dense<0.000000e+00> : vector<2x128xf32>
    %334 = tpu.matmul %331, %333, %cst_111 {dimension_numbers = #tpu.dot_dimension_numbers<[1], [0], [0], [1], [0, 0, 1, 1], [], []>} : vector<2x128xf32>, vector<128x128xf32>, vector<2x128xf32> -> vector<2x128xf32>
    %c6 = arith.constant 6 : index
    %c0_112 = arith.constant 0 : index
    %335 = vector.load %arg4[%c6, %c0_112] : memref<8x128xf32, #tpu.memory_space<vmem>>, vector<1x128xf32>
    %336 = vector.broadcast %335 : vector<1x128xf32> to vector<2x128xf32>
    %337 = arith.addf %334, %336 : vector<2x128xf32>
    %c0_113 = arith.constant 0 : index
    %c0_114 = arith.constant 0 : index
    %c0_115 = arith.constant 0 : index
    %338 = vector.load %arg5[%c0_113, %c0_114, %c0_115] : memref<2x2x128xf32, #tpu.memory_space<vmem>>, vector<1x2x128xf32>
    %339 = vector.shape_cast %338 : vector<1x2x128xf32> to vector<2x128xf32>
    %340 = vector.shape_cast %337 : vector<2x128xf32> to vector<1x2x128xf32>
    tpu.vector_store %arg5[%c0_113, %c0_114, %c0_115], %340 {strides = array<i32>} : memref<2x2x128xf32, #tpu.memory_space<vmem>>, vector<1x2x128xf32>,
    %c3_116 = arith.constant 3 : index
    %c0_117 = arith.constant 0 : index
    %c0_118 = arith.constant 0 : index
    %341 = vector.load %arg3[%c3_116, %c0_117, %c0_118] : memref<4x128x128xf32, #tpu.memory_space<vmem>>, vector<1x128x128xf32>
    %342 = vector.shape_cast %341 : vector<1x128x128xf32> to vector<128x128xf32>
    %cst_119 = arith.constant dense<0.000000e+00> : vector<2x128xf32>
    %343 = tpu.matmul %323, %342, %cst_119 {dimension_numbers = #tpu.dot_dimension_numbers<[1], [0], [0], [1], [0, 0, 1, 1], [], []>} : vector<2x128xf32>, vector<128x128xf32>, vector<2x128xf32> -> vector<2x128xf32>
    %c7 = arith.constant 7 : index
    %c0_120 = arith.constant 0 : index
    %344 = vector.load %arg4[%c7, %c0_120] : memref<8x128xf32, #tpu.memory_space<vmem>>, vector<1x128xf32>
    %345 = vector.broadcast %344 : vector<1x128xf32> to vector<2x128xf32>
    %346 = arith.addf %343, %345 : vector<2x128xf32>
    %c1_121 = arith.constant 1 : index
    %c0_122 = arith.constant 0 : index
    %c0_123 = arith.constant 0 : index
    %347 = vector.load %arg5[%c1_121, %c0_122, %c0_123] : memref<2x2x128xf32, #tpu.memory_space<vmem>>, vector<1x2x128xf32>
    %348 = vector.shape_cast %347 : vector<1x2x128xf32> to vector<2x128xf32>
    %349 = vector.shape_cast %346 : vector<2x128xf32> to vector<1x2x128xf32>
    tpu.vector_store %arg5[%c1_121, %c0_122, %c0_123], %349 {strides = array<i32>} : memref<2x2x128xf32, #tpu.memory_space<vmem>>, vector<1x2x128xf32>,
    return
  }
}

</mosaic_0001>

<llo_original>
// kernel: _forward_core.1
$region0: #{_forward_core.1}
  #allocation0 [shape = 'u32[]', space=smem, size = 0x4, offset = 0x4, fixed_abs, tag = 'smem constant byte address 0x4 - core index']
  #allocation1 [shape = 'u32[144,128]{1,0:T(1,128)}', space=vmem, size = 0x12000, scoped, tag = 'internal scratch']
  %s0 = inlined_call_operand.vmem [shape: s32[64,1], index: 0, kind: input, shape index: {}]
  %s1 = inlined_call_operand.hbm [shape: f32[2,128,128], index: 1, kind: input, shape index: {}]
  %s2 = inlined_call_operand.vmem [shape: f32[16,128], index: 2, kind: input, shape index: {}]
  %s3 = inlined_call_operand.hbm [shape: f32[4,128,128], index: 3, kind: input, shape index: {}]
  %s4 = inlined_call_operand.vmem [shape: f32[8,128], index: 4, kind: input, shape index: {}]
  %s5 = inlined_call_operand.vmem [shape: f32[2,2,128], index: 5, kind: output, shape index: {}]
  %s6 = sld [smem:[#allocation0]]
  $region38: #{_forward_core.1} parent=0
    _
  %s8 = ssub.s32 1, %s6
  %s9 = scalar_select 0, %s8, %s6
  $region1: #{_forward_core.1} parent=0
    #allocation2 [shape = 'u8[131072]{0}', space=vmem, size = 0x20000, scoped, tag = 'input window, operand 1, single buffered']
    #allocation3 [shape = 's32[1]{0}', space=sflag, size = 0x4, scoped, tag = 'scoped memory for _forward_core.1']
    #allocation4 [shape = 'u8[262144]{0}', space=vmem, size = 0x40000, scoped, tag = 'input window, operand 3, single buffered']
    #allocation5 [shape = 's32[1]{0}', space=sflag, size = 0x4, scoped, tag = 'scoped memory for _forward_core.1']
    %10 = vsyncpa [#allocation3], 0
    %11 = vsyncpa [#allocation5], 0
    // Predicated region
    $region2: #{_forward_core.1} parent=1 // pred_check
      _
    $region3: #{_forward_core.1} parent=1 // pred_check_branch
      %13 = sbr.rel (0) target = $region5
    $region4: #{_forward_core.1} parent=1 // pred_region
      _
    $region5: #{_forward_core.1} parent=1 // pred_fallthru
      _
    // Predicated region
    $region6: #{_forward_core.1} parent=1 // pred_check
      _
    $region7: #{_forward_core.1} parent=1 // pred_check_branch
      %15 = sbr.rel (0) target = $region9
    $region8: #{_forward_core.1} parent=1 // pred_region
      %s17 = ssub.s32 4096, 4096
      %18 = vsyncadd [#allocation3], %s17
      %s19 = sshll.u32 [#allocation2], 4
      %s20 = int_to_ptr.vmem [resolvable:$true] %s19
      %25 = dma.hbm_to_vmem [thread:$0]  %s1, 4096, %s20, [#allocation3], 128, 128, 8
    $region9: #{_forward_core.1} parent=1 // pred_fallthru
      _
    // Predicated region
    $region10: #{_forward_core.1} parent=1 // pred_check
      _
    $region11: #{_forward_core.1} parent=1 // pred_check_branch
      %27 = sbr.rel (0) target = $region13
    $region12: #{_forward_core.1} parent=1 // pred_region
      _
    $region13: #{_forward_core.1} parent=1 // pred_fallthru
      _
    // Predicated region
    $region14: #{_forward_core.1} parent=1 // pred_check
      _
    $region15: #{_forward_core.1} parent=1 // pred_check_branch
      %29 = sbr.rel (0) target = $region17
    $region16: #{_forward_core.1} parent=1 // pred_region
      %s31 = ssub.s32 8192, 8192
      %32 = vsyncadd [#allocation5], %s31
      %s33 = sshll.u32 [#allocation4], 4
      %s34 = int_to_ptr.vmem [resolvable:$true] %s33
      %39 = dma.hbm_to_vmem [thread:$0]  %s3, 8192, %s34, [#allocation5], 128, 128, 8
    $region17: #{_forward_core.1} parent=1 // pred_fallthru
      _
    // Predicated region
    $region18: #{_forward_core.1} parent=1 // pred_check
      _
    $region19: #{_forward_core.1} parent=1 // pred_check_branch
      %41 = sbr.rel (0) target = $region21
    $region20: #{_forward_core.1} parent=1 // pred_region
      _
    $region21: #{_forward_core.1} parent=1 // pred_fallthru
      _
    // Predicated region
    $region22: #{_forward_core.1} parent=1 // pred_check
      _
    $region23: #{_forward_core.1} parent=1 // pred_check_branch
      %43 = sbr.rel (0) target = $region25
    $region24: #{_forward_core.1} parent=1 // pred_region
      %44 = dma.done [#allocation3], 4096
    $region25: #{_forward_core.1} parent=1 // pred_fallthru
      _
    // Predicated region
    $region26: #{_forward_core.1} parent=1 // pred_check
      _
    $region27: #{_forward_core.1} parent=1 // pred_check_branch
      %46 = sbr.rel (0) target = $region29
    $region28: #{_forward_core.1} parent=1 // pred_region
      %47 = dma.done [#allocation5], 8192
    $region29: #{_forward_core.1} parent=1 // pred_fallthru
      _
    %v48 = vld [vmem:[%s2] sm:$0xff]
    %v49 = vld [vmem:[%s2 + $0x8] sm:$0xff]
    %v50 = vld [vmem:[%s0] sm:$0xff]
    %v51 = vld [vmem:[%s0 + $0x8] sm:$0xff]
    %v52 = vld [vmem:[%s0 + $0x10] sm:$0xff]
    %v53 = vld [vmem:[%s0 + $0x18] sm:$0xff]
    %v54 = vld [vmem:[%s0 + $0x20] sm:$0xff]
    %v55 = vld [vmem:[%s0 + $0x28] sm:$0xff]
    %v56 = vld [vmem:[%s0 + $0x30] sm:$0xff]
    %v57 = vld [vmem:[%s0 + $0x38] sm:$0xff]
    %v58 = vlaneseq
    %v59 = vand.u32 %v58, 127
    %60 = vset.pattern.permute.xlu0 0
    %61 = vperm.xlu0 %60, %v50
    %v62 = vpop.permute.xlu0 %61
    %63 = vset.pattern.permute.xlu0 0
    %64 = vperm.xlu0 %63, %v51
    %v65 = vpop.permute.xlu0 %64
    %66 = vset.pattern.permute.xlu0 0
    %67 = vperm.xlu0 %66, %v52
    %v68 = vpop.permute.xlu0 %67
    %69 = vset.pattern.permute.xlu0 0
    %70 = vperm.xlu0 %69, %v53
    %v71 = vpop.permute.xlu0 %70
    %72 = vset.pattern.permute.xlu0 0
    %73 = vperm.xlu0 %72, %v54
    %v74 = vpop.permute.xlu0 %73
    %75 = vset.pattern.permute.xlu0 0
    %76 = vperm.xlu0 %75, %v55
    %v77 = vpop.permute.xlu0 %76
    %78 = vset.pattern.permute.xlu0 0
    %79 = vperm.xlu0 %78, %v56
    %v80 = vpop.permute.xlu0 %79
    %81 = vset.pattern.permute.xlu0 0
    %82 = vperm.xlu0 %81, %v57
    %v83 = vpop.permute.xlu0 %82
    %vm84 = vcmp.eq.s32.totalorder %v62, %v59
    %vm85 = vcmp.eq.s32.totalorder %v65, %v59
    %vm86 = vcmp.eq.s32.totalorder %v68, %v59
    %vm87 = vcmp.eq.s32.totalorder %v71, %v59
    %vm88 = vcmp.eq.s32.totalorder %v74, %v59
    %vm89 = vcmp.eq.s32.totalorder %v77, %v59
    %vm90 = vcmp.eq.s32.totalorder %v80, %v59
    %vm91 = vcmp.eq.s32.totalorder %v83, %v59
    %v92 = vsel %vm84, 1, 0
    %v93 = vsel %vm85, 1, 0
    %v94 = vsel %vm86, 1, 0
    %v95 = vsel %vm87, 1, 0
    %v96 = vsel %vm88, 1, 0
    %v97 = vsel %vm89, 1, 0
    %v98 = vsel %vm90, 1, 0
    %v99 = vsel %vm91, 1, 0
    %v100 = vcvt.s32.f32 %v92
    %v101 = vcvt.s32.f32 %v93
    %v102 = vcvt.s32.f32 %v94
    %v103 = vcvt.s32.f32 %v95
    %v104 = vcvt.s32.f32 %v96
    %v105 = vcvt.s32.f32 %v97
    %v106 = vcvt.s32.f32 %v98
    %v107 = vcvt.s32.f32 %v99
    %v108 = vld [vmem:[#allocation2] sm:$0xff]
    %v109 = vld [vmem:[#allocation2 + $0x8] sm:$0xff]
    %v110 = vld [vmem:[#allocation2 + $0x10] sm:$0xff]
    %v111 = vld [vmem:[#allocation2 + $0x18] sm:$0xff]
    %v112 = vld [vmem:[#allocation2 + $0x20] sm:$0xff]
    %v113 = vld [vmem:[#allocation2 + $0x28] sm:$0xff]
    %v114 = vld [vmem:[#allocation2 + $0x30] sm:$0xff]
    %v115 = vld [vmem:[#allocation2 + $0x38] sm:$0xff]
    %v116 = vld [vmem:[#allocation2 + $0x40] sm:$0xff]
    %v117 = vld [vmem:[#allocation2 + $0x48] sm:$0xff]
    %v118 = vld [vmem:[#allocation2 + $0x50] sm:$0xff]
    %v119 = vld [vmem:[#allocation2 + $0x58] sm:$0xff]
    %v120 = vld [vmem:[#allocation2 + $0x60] sm:$0xff]
    %v121 = vld [vmem:[#allocation2 + $0x68] sm:$0xff]
    %v122 = vld [vmem:[#allocation2 + $0x70] sm:$0xff]
    %v123 = vld [vmem:[#allocation2 + $0x78] sm:$0xff]
    %124 = vmatprep.subr.mxu0 0.0
    %125 = vmatpush1.msra.mxu0 %v108
    %126 = vmatprep.subr.mxu0 0.0
    %127 = vmatpush1.msra.mxu0 %v109
    %128 = vmatprep.subr.mxu0 0.0
    %129 = vmatpush1.msra.mxu0 %v110
    %130 = vmatprep.subr.mxu0 0.0
    %131 = vmatpush1.msra.mxu0 %v111
    %132 = vmatprep.subr.mxu0 0.0
    %133 = vmatpush1.msra.mxu0 %v112
    %134 = vmatprep.subr.mxu0 0.0
    %135 = vmatpush1.msra.mxu0 %v113
    %136 = vmatprep.subr.mxu0 0.0
    %137 = vmatpush1.msra.mxu0 %v114
    %138 = vmatprep.subr.mxu0 0.0
    %139 = vmatpush1.msra.mxu0 %v115
    %140 = vmatprep.subr.mxu0 0.0
    %141 = vmatpush1.msra.mxu0 %v116
    %142 = vmatprep.subr.mxu0 0.0
    %143 = vmatpush1.msra.mxu0 %v117
    %144 = vmatprep.subr.mxu0 0.0
    %145 = vmatpush1.msra.mxu0 %v118
    %146 = vmatprep.subr.mxu0 0.0
    %147 = vmatpush1.msra.mxu0 %v119
    %148 = vmatprep.subr.mxu0 0.0
    %149 = vmatpush1.msra.mxu0 %v120
    %150 = vmatprep.subr.mxu0 0.0
    %151 = vmatpush1.msra.mxu0 %v121
    %152 = vmatprep.subr.mxu0 0.0
    %153 = vmatpush1.msra.mxu0 %v122
    %154 = vmatprep.subr.mxu0 0.0
    %155 = vmatpush1.msra.mxu0 %v123
    %156 = vmatprep.subr.mxu0 0.0
    %157 = vmatpush1.msra.mxu0 0.0
    %158 = vmatprep.subr.mxu0 0.0
    %159 = vmatpush1.msra.mxu0 0.0
    %160 = vmatprep.subr.mxu0 0.0
    %161 = vmatpush1.msra.mxu0 0.0
    %162 = vmatprep.subr.mxu0 0.0
    %163 = vmatpush1.msra.mxu0 0.0
    %164 = vmatprep.subr.mxu0 0.0
    %165 = vmatpush1.msra.mxu0 0.0
    %166 = vmatprep.subr.mxu0 0.0
    %167 = vmatpush1.msra.mxu0 0.0
    %168 = vmatprep.subr.mxu0 0.0
    %169 = vmatpush1.msra.mxu0 0.0
    %170 = vmatprep.subr.mxu0 0.0
    %171 = vmatpush1.msra.mxu0 0.0
    %172 = vmatprep.subr.mxu0 0.0
    %173 = vmatpush1.msra.mxu0 0.0
    %174 = vmatprep.subr.mxu0 0.0
    %175 = vmatpush1.msra.mxu0 0.0
    %176 = vmatprep.subr.mxu0 0.0
    %177 = vmatpush1.msra.mxu0 0.0
    %178 = vmatprep.subr.mxu0 0.0
    %179 = vmatpush1.msra.mxu0 0.0
    %180 = vmatprep.subr.mxu0 0.0
    %181 = vmatpush1.msra.mxu0 0.0
    %182 = vmatprep.subr.mxu0 0.0
    %183 = vmatpush1.msra.mxu0 0.0
    %184 = vmatprep.subr.mxu0 0.0
    %185 = vmatpush1.msra.mxu0 0.0
    %186 = vmatprep.subr.mxu0 0.0
    %187 = vmatpush1.msra.mxu0 0.0
    %188 = vmatprep.mubr.f32.mxu0 0.0
    %189 = vmatmul.mubr.f32.gmra.mrb[0].mxu0 %v100
    %v190 = vpop.f32.mrb[0].mxu0
    %v191 = vadd.f32 0.0, %v190
    %v192 = vpop.f32.mrb[0].mxu0
    %193 = vmatprep.mubr.f32.mxu0 0.0
    %194 = vmatmul.mubr.f32.gmra.mrb[0].mxu0 %v101
    %v195 = vpop.f32.mrb[0].mxu0
    %v196 = vadd.f32 0.0, %v195
    %v197 = vpop.f32.mrb[0].mxu0
    %198 = vmatprep.mubr.f32.mxu0 0.0
    %199 = vmatmul.mubr.f32.gmra.mrb[0].mxu0 %v102
    %v200 = vpop.f32.mrb[0].mxu0
    %v201 = vadd.f32 0.0, %v200
    %v202 = vpop.f32.mrb[0].mxu0
    %203 = vmatprep.mubr.f32.mxu0 0.0
    %204 = vmatmul.mubr.f32.gmra.mrb[0].mxu0 %v103
    %v205 = vpop.f32.mrb[0].mxu0
    %v206 = vadd.f32 0.0, %v205
    %v207 = vpop.f32.mrb[0].mxu0
    %208 = vmatprep.mubr.f32.mxu0 0.0
    %209 = vmatmul.mubr.f32.gmra.mrb[0].mxu0 %v104
    %v210 = vpop.f32.mrb[0].mxu0
    %v211 = vadd.f32 0.0, %v210
    %v212 = vpop.f32.mrb[0].mxu0
    %213 = vdwg.mxu0
    %s214 = scalar_lea.vmem [#allocation2], 128
    %v215 = vld [vmem:[%s214] sm:$0xff]
    %v216 = vld [vmem:[%s214 + $0x8] sm:$0xff]
    %v217 = vld [vmem:[%s214 + $0x10] sm:$0xff]
    %v218 = vld [vmem:[%s214 + $0x18] sm:$0xff]
    %v219 = vld [vmem:[%s214 + $0x20] sm:$0xff]
    %v220 = vld [vmem:[%s214 + $0x28] sm:$0xff]
    %v221 = vld [vmem:[%s214 + $0x30] sm:$0xff]
    %v222 = vld [vmem:[%s214 + $0x38] sm:$0xff]
    %v223 = vld [vmem:[%s214 + $0x40] sm:$0xff]
    %v224 = vld [vmem:[%s214 + $0x48] sm:$0xff]
    %v225 = vld [vmem:[%s214 + $0x50] sm:$0xff]
    %v226 = vld [vmem:[%s214 + $0x58] sm:$0xff]
    %v227 = vld [vmem:[%s214 + $0x60] sm:$0xff]
    %v228 = vld [vmem:[%s214 + $0x68] sm:$0xff]
    %v229 = vld [vmem:[%s214 + $0x70] sm:$0xff]
    %v230 = vld [vmem:[%s214 + $0x78] sm:$0xff]
    %231 = vmatprep.subr.mxu0 0.0
    %232 = vmatpush1.msra.mxu0 %v215
    %233 = vmatprep.subr.mxu0 0.0
    %234 = vmatpush1.msra.mxu0 %v216
    %235 = vmatprep.subr.mxu0 0.0
    %236 = vmatpush1.msra.mxu0 %v217
    %237 = vmatprep.subr.mxu0 0.0
    %238 = vmatpush1.msra.mxu0 %v218
    %239 = vmatprep.subr.mxu0 0.0
    %240 = vmatpush1.msra.mxu0 %v219
    %241 = vmatprep.subr.mxu0 0.0
    %242 = vmatpush1.msra.mxu0 %v220
    %243 = vmatprep.subr.mxu0 0.0
    %244 = vmatpush1.msra.mxu0 %v221
    %245 = vmatprep.subr.mxu0 0.0
    %246 = vmatpush1.msra.mxu0 %v222
    %247 = vmatprep.subr.mxu0 0.0
    %248 = vmatpush1.msra.mxu0 %v223
    %249 = vmatprep.subr.mxu0 0.0
    %250 = vmatpush1.msra.mxu0 %v224
    %251 = vmatprep.subr.mxu0 0.0
    %252 = vmatpush1.msra.mxu0 %v225
    %253 = vmatprep.subr.mxu0 0.0
    %254 = vmatpush1.msra.mxu0 %v226
    %255 = vmatprep.subr.mxu0 0.0
    %256 = vmatpush1.msra.mxu0 %v227
    %257 = vmatprep.subr.mxu0 0.0
    %258 = vmatpush1.msra.mxu0 %v228
    %259 = vmatprep.subr.mxu0 0.0
    %260 = vmatpush1.msra.mxu0 %v229
    %261 = vmatprep.subr.mxu0 0.0
    %262 = vmatpush1.msra.mxu0 %v230
    %263 = vmatprep.subr.mxu0 0.0
    %264 = vmatpush1.msra.mxu0 0.0
    %265 = vmatprep.subr.mxu0 0.0
    %266 = vmatpush1.msra.mxu0 0.0
    %267 = vmatprep.subr.mxu0 0.0
    %268 = vmatpush1.msra.mxu0 0.0
    %269 = vmatprep.subr.mxu0 0.0
    %270 = vmatpush1.msra.mxu0 0.0
    %271 = vmatprep.subr.mxu0 0.0
    %272 = vmatpush1.msra.mxu0 0.0
    %273 = vmatprep.subr.mxu0 0.0
    %274 = vmatpush1.msra.mxu0 0.0
    %275 = vmatprep.subr.mxu0 0.0
    %276 = vmatpush1.msra.mxu0 0.0
    %277 = vmatprep.subr.mxu0 0.0
    %278 = vmatpush1.msra.mxu0 0.0
    %279 = vmatprep.subr.mxu0 0.0
    %280 = vmatpush1.msra.mxu0 0.0
    %281 = vmatprep.subr.mxu0 0.0
    %282 = vmatpush1.msra.mxu0 0.0
    %283 = vmatprep.subr.mxu0 0.0
    %284 = vmatpush1.msra.mxu0 0.0
    %285 = vmatprep.subr.mxu0 0.0
    %286 = vmatpush1.msra.mxu0 0.0
    %287 = vmatprep.subr.mxu0 0.0
    %288 = vmatpush1.msra.mxu0 0.0
    %289 = vmatprep.subr.mxu0 0.0
    %290 = vmatpush1.msra.mxu0 0.0
    %291 = vmatprep.subr.mxu0 0.0
    %292 = vmatpush1.msra.mxu0 0.0
    %293 = vmatprep.subr.mxu0 0.0
    %294 = vmatpush1.msra.mxu0 0.0
    %295 = vmatprep.mubr.f32.mxu0 0.0
    %296 = vmatmul.mubr.f32.gmra.mrb[0].mxu0 %v105
    %v297 = vpop.f32.mrb[0].mxu0
    %v298 = vadd.f32 0.0, %v297
    %v299 = vpop.f32.mrb[0].mxu0
    %300 = vmatprep.mubr.f32.mxu0 0.0
    %301 = vmatmul.mubr.f32.gmra.mrb[0].mxu0 %v106
    %v302 = vpop.f32.mrb[0].mxu0
    %v303 = vadd.f32 0.0, %v302
    %v304 = vpop.f32.mrb[0].mxu0
    %305 = vdwg.mxu0
    %v306 = vadd.f32 %v191, %v48
    %v307 = vadd.f32 %v196, %v48
    %v308 = vadd.f32 %v201, %v48
    %v309 = vadd.f32 %v206, %v48
    %v310 = vadd.f32 %v211, %v48
    %v311 = vadd.f32 %v298, %v49
    %v312 = vadd.f32 %v303, %v49
    %v313 = vlaneseq
    %v314 = vshrl.u32 %v313, 7
    %v315 = vsub.s32 0, %v314
    %v316 = vrot.slane %v48, %v315
    %317 = vmatprep.subr.mxu0 0.0
    %318 = vmatpush1.msra.mxu0 %v108
    %319 = vmatprep.subr.mxu0 0.0
    %320 = vmatpush1.msra.mxu0 %v109
    %321 = vmatprep.subr.mxu0 0.0
    %322 = vmatpush1.msra.mxu0 %v110
    %323 = vmatprep.subr.mxu0 0.0
    %324 = vmatpush1.msra.mxu0 %v111
    %325 = vmatprep.subr.mxu0 0.0
    %326 = vmatpush1.msra.mxu0 %v112
    %327 = vmatprep.subr.mxu0 0.0
    %328 = vmatpush1.msra.mxu0 %v113
    %329 = vmatprep.subr.mxu0 0.0
    %330 = vmatpush1.msra.mxu0 %v114
    %331 = vmatprep.subr.mxu0 0.0
    %332 = vmatpush1.msra.mxu0 %v115
    %333 = vmatprep.subr.mxu0 0.0
    %334 = vmatpush1.msra.mxu0 %v116
    %335 = vmatprep.subr.mxu0 0.0
    %336 = vmatpush1.msra.mxu0 %v117
    %337 = vmatprep.subr.mxu0 0.0
    %338 = vmatpush1.msra.mxu0 %v118
    %339 = vmatprep.subr.mxu0 0.0
    %340 = vmatpush1.msra.mxu0 %v119
    %341 = vmatprep.subr.mxu0 0.0
    %342 = vmatpush1.msra.mxu0 %v120
    %343 = vmatprep.subr.mxu0 0.0
    %344 = vmatpush1.msra.mxu0 %v121
    %345 = vmatprep.subr.mxu0 0.0
    %346 = vmatpush1.msra.mxu0 %v122
    %347 = vmatprep.subr.mxu0 0.0
    %348 = vmatpush1.msra.mxu0 %v123
    %349 = vmatprep.subr.mxu0 0.0
    %350 = vmatpush1.msra.mxu0 0.0
    %351 = vmatprep.subr.mxu0 0.0
    %352 = vmatpush1.msra.mxu0 0.0
    %353 = vmatprep.subr.mxu0 0.0
    %354 = vmatpush1.msra.mxu0 0.0
    %355 = vmatprep.subr.mxu0 0.0
    %356 = vmatpush1.msra.mxu0 0.0
    %357 = vmatprep.subr.mxu0 0.0
    %358 = vmatpush1.msra.mxu0 0.0
    %359 = vmatprep.subr.mxu0 0.0
    %360 = vmatpush1.msra.mxu0 0.0
    %361 = vmatprep.subr.mxu0 0.0
    %362 = vmatpush1.msra.mxu0 0.0
    %363 = vmatprep.subr.mxu0 0.0
    %364 = vmatpush1.msra.mxu0 0.0
    %365 = vmatprep.subr.mxu0 0.0
    %366 = vmatpush1.msra.mxu0 0.0
    %367 = vmatprep.subr.mxu0 0.0
    %368 = vmatpush1.msra.mxu0 0.0
    %369 = vmatprep.subr.mxu0 0.0
    %370 = vmatpush1.msra.mxu0 0.0
    %371 = vmatprep.subr.mxu0 0.0
    %372 = vmatpush1.msra.mxu0 0.0
    %373 = vmatprep.subr.mxu0 0.0
    %374 = vmatpush1.msra.mxu0 0.0
    %375 = vmatprep.subr.mxu0 0.0
    %376 = vmatpush1.msra.mxu0 0.0
    %377 = vmatprep.subr.mxu0 0.0
    %378 = vmatpush1.msra.mxu0 0.0
    %379 = vmatprep.subr.mxu0 0.0
    %380 = vmatpush1.msra.mxu0 0.0
    %381 = vmatprep.mubr.f32.mxu0 0.0
    %382 = vmatmul.mubr.f32.gmra.mrb[0].mxu0 %v107
    %v383 = vpop.f32.mrb[0].mxu0
    %v384 = vadd.f32 %v316, %v383
    %v385 = vpop.f32.mrb[0].mxu0
    %386 = vdwg.mxu0
    %v387 = vld [vmem:[#allocation4] sm:$0xff]
    %v388 = vld [vmem:[#allocation4 + $0x8] sm:$0xff]
    %v389 = vld [vmem:[#allocation4 + $0x10] sm:$0xff]
    %v390 = vld [vmem:[#allocation4 + $0x18] sm:$0xff]
    %v391 = vld [vmem:[#allocation4 + $0x20] sm:$0xff]
    %v392 = vld [vmem:[#allocation4 + $0x28] sm:$0xff]
    %v393 = vld [vmem:[#allocation4 + $0x30] sm:$0xff]
    %v394 = vld [vmem:[#allocation4 + $0x38] sm:$0xff]
    %v395 = vld [vmem:[#allocation4 + $0x40] sm:$0xff]
    %v396 = vld [vmem:[#allocation4 + $0x48] sm:$0xff]
    %v397 = vld [vmem:[#allocation4 + $0x50] sm:$0xff]
    %v398 = vld [vmem:[#allocation4 + $0x58] sm:$0xff]
    %v399 = vld [vmem:[#allocation4 + $0x60] sm:$0xff]
    %v400 = vld [vmem:[#allocation4 + $0x68] sm:$0xff]
    %v401 = vld [vmem:[#allocation4 + $0x70] sm:$0xff]
    %v402 = vld [vmem:[#allocation4 + $0x78] sm:$0xff]
    %v403 = vld [vmem:[%s4] sm:$0x1]
    %v404 = vlaneseq
    %v405 = vshrl.u32 %v404, 7
    %v406 = vsub.s32 0, %v405
    %v407 = vrot.slane %v403, %v406
    %408 = vmatprep.subr.mxu0 0.0
    %409 = vmatpush1.msra.mxu0 %v387
    %410 = vmatprep.subr.mxu0 0.0
    %411 = vmatpush1.msra.mxu0 %v388
    %412 = vmatprep.subr.mxu0 0.0
    %413 = vmatpush1.msra.mxu0 %v389
    %414 = vmatprep.subr.mxu0 0.0
    %415 = vmatpush1.msra.mxu0 %v390
    %416 = vmatprep.subr.mxu0 0.0
    %417 = vmatpush1.msra.mxu0 %v391
    %418 = vmatprep.subr.mxu0 0.0
    %419 = vmatpush1.msra.mxu0 %v392
    %420 = vmatprep.subr.mxu0 0.0
    %421 = vmatpush1.msra.mxu0 %v393
    %422 = vmatprep.subr.mxu0 0.0
    %423 = vmatpush1.msra.mxu0 %v394
    %424 = vmatprep.subr.mxu0 0.0
    %425 = vmatpush1.msra.mxu0 %v395
    %426 = vmatprep.subr.mxu0 0.0
    %427 = vmatpush1.msra.mxu0 %v396
    %428 = vmatprep.subr.mxu0 0.0
    %429 = vmatpush1.msra.mxu0 %v397
    %430 = vmatprep.subr.mxu0 0.0
    %431 = vmatpush1.msra.mxu0 %v398
    %432 = vmatprep.subr.mxu0 0.0
    %433 = vmatpush1.msra.mxu0 %v399
    %434 = vmatprep.subr.mxu0 0.0
    %435 = vmatpush1.msra.mxu0 %v400
    %436 = vmatprep.subr.mxu0 0.0
    %437 = vmatpush1.msra.mxu0 %v401
    %438 = vmatprep.subr.mxu0 0.0
    %439 = vmatpush1.msra.mxu0 %v402
    %440 = vmatprep.subr.mxu0 0.0
    %441 = vmatpush1.msra.mxu0 0.0
    %442 = vmatprep.subr.mxu0 0.0
    %443 = vmatpush1.msra.mxu0 0.0
    %444 = vmatprep.subr.mxu0 0.0
    %445 = vmatpush1.msra.mxu0 0.0
    %446 = vmatprep.subr.mxu0 0.0
    %447 = vmatpush1.msra.mxu0 0.0
    %448 = vmatprep.subr.mxu0 0.0
    %449 = vmatpush1.msra.mxu0 0.0
    %450 = vmatprep.subr.mxu0 0.0
    %451 = vmatpush1.msra.mxu0 0.0
    %452 = vmatprep.subr.mxu0 0.0
    %453 = vmatpush1.msra.mxu0 0.0
    %454 = vmatprep.subr.mxu0 0.0
    %455 = vmatpush1.msra.mxu0 0.0
    %456 = vmatprep.subr.mxu0 0.0
    %457 = vmatpush1.msra.mxu0 0.0
    %458 = vmatprep.subr.mxu0 0.0
    %459 = vmatpush1.msra.mxu0 0.0
    %460 = vmatprep.subr.mxu0 0.0
    %461 = vmatpush1.msra.mxu0 0.0
    %462 = vmatprep.subr.mxu0 0.0
    %463 = vmatpush1.msra.mxu0 0.0
    %464 = vmatprep.subr.mxu0 0.0
    %465 = vmatpush1.msra.mxu0 0.0
    %466 = vmatprep.subr.mxu0 0.0
    %467 = vmatpush1.msra.mxu0 0.0
    %468 = vmatprep.subr.mxu0 0.0
    %469 = vmatpush1.msra.mxu0 0.0
    %470 = vmatprep.subr.mxu0 0.0
    %471 = vmatpush1.msra.mxu0 0.0
    %472 = vmatprep.mubr.f32.mxu0 0.0
    %473 = vmatmul.mubr.f32.gmra.mrb[0].mxu0 %v384
    %v474 = vpop.f32.mrb[0].mxu0
    %v475 = vadd.f32 %v407, %v474
    %v476 = vpop.f32.mrb[0].mxu0
    %477 = vdwg.mxu0
    %v478 = vtanh.pop %v475
    %v479 = vmul.f32 %v306, %v306
    %v480 = vmul.f32 %v307, %v307
    %v481 = vmul.f32 %v308, %v308
    %v482 = vmul.f32 %v309, %v309
    %v483 = vmul.f32 %v310, %v310
    %484 = vadd.xlane.f32.xlu0 %v479
    %v485 = vpop.xlane.xlu0 %484
    %486 = vadd.xlane.f32.xlu0 %v480
    %v487 = vpop.xlane.xlu0 %486
    %488 = vadd.xlane.f32.xlu0 %v481
    %v489 = vpop.xlane.xlu0 %488
    %490 = vadd.xlane.f32.xlu0 %v482
    %v491 = vpop.xlane.xlu0 %490
    %492 = vadd.xlane.f32.xlu0 %v483
    %v493 = vpop.xlane.xlu0 %492
    %v494 = vmax.f32 %v485, 1e-12
    %v495 = vmax.f32 %v487, 1e-12
    %v496 = vmax.f32 %v489, 1e-12
    %v497 = vmax.f32 %v491, 1e-12
    %v498 = vmax.f32 %v493, 1e-12
    %v499 = vrsqrt.pop %v494
    %v500 = vrsqrt.pop %v495
    %v501 = vrsqrt.pop %v496
    %v502 = vrsqrt.pop %v497
    %v503 = vrsqrt.pop %v498
    %v504 = vmul.f32 %v306, %v499
    %v505 = vmul.f32 %v307, %v500
    %v506 = vmul.f32 %v308, %v501
    %v507 = vmul.f32 %v309, %v502
    %v508 = vmul.f32 %v310, %v503
    %v509 = vmul.f32 %v478, %v478
    %vm510 = vcmask 1044480
    %v511 = vsel %vm510, %v509, 0.0
    %512 = vadd.xlane.f32.xlu0 %v511
    %v513 = vpop.xlane.xlu0 %512
    %v514 = vmax.f32 %v513, 1e-12
    %v515 = vrsqrt.pop %v514
    %v516 = vmul.f32 %v478, %v515
    %517 = vmatprep.subr.mxu0 0.0
    %518 = vmatpush1.xpose.msra.mxu0 %v516
    %519 = vmatprep.subr.mxu0 0.0
    %520 = vmatpush1.xpose.msra.mxu0 0.0
    %521 = vmatprep.subr.mxu0 0.0
    %522 = vmatpush1.xpose.msra.mxu0 0.0
    %523 = vmatprep.subr.mxu0 0.0
    %524 = vmatpush1.xpose.msra.mxu0 0.0
    %525 = vmatprep.subr.mxu0 0.0
    %526 = vmatpush1.xpose.msra.mxu0 0.0
    %527 = vmatprep.subr.mxu0 0.0
    %528 = vmatpush1.xpose.msra.mxu0 0.0
    %529 = vmatprep.subr.mxu0 0.0
    %530 = vmatpush1.xpose.msra.mxu0 0.0
    %531 = vmatprep.subr.mxu0 0.0
    %532 = vmatpush1.xpose.msra.mxu0 0.0
    %533 = vmatprep.subr.mxu0 0.0
    %534 = vmatpush1.xpose.msra.mxu0 0.0
    %535 = vmatprep.subr.mxu0 0.0
    %536 = vmatpush1.xpose.msra.mxu0 0.0
    %537 = vmatprep.subr.mxu0 0.0
    %538 = vmatpush1.xpose.msra.mxu0 0.0
    %539 = vmatprep.subr.mxu0 0.0
    %540 = vmatpush1.xpose.msra.mxu0 0.0
    %541 = vmatprep.subr.mxu0 0.0
    %542 = vmatpush1.xpose.msra.mxu0 0.0
    %543 = vmatprep.subr.mxu0 0.0
    %544 = vmatpush1.xpose.msra.mxu0 0.0
    %545 = vmatprep.subr.mxu0 0.0
    %546 = vmatpush1.xpose.msra.mxu0 0.0
    %547 = vmatprep.subr.mxu0 0.0
    %548 = vmatpush1.xpose.msra.mxu0 0.0
    %549 = vmatprep.subr.mxu0 0.0
    %550 = vmatpush1.xpose.msra.mxu0 0.0
    %551 = vmatprep.subr.mxu0 0.0
    %552 = vmatpush1.xpose.msra.mxu0 0.0
    %553 = vmatprep.subr.mxu0 0.0
    %554 = vmatpush1.xpose.msra.mxu0 0.0
    %555 = vmatprep.subr.mxu0 0.0
    %556 = vmatpush1.xpose.msra.mxu0 0.0
    %557 = vmatprep.subr.mxu0 0.0
    %558 = vmatpush1.xpose.msra.mxu0 0.0
    %559 = vmatprep.subr.mxu0 0.0
    %560 = vmatpush1.xpose.msra.mxu0 0.0
    %561 = vmatprep.subr.mxu0 0.0
    %562 = vmatpush1.xpose.msra.mxu0 0.0
    %563 = vmatprep.subr.mxu0 0.0
    %564 = vmatpush1.xpose.msra.mxu0 0.0
    %565 = vmatprep.subr.mxu0 0.0
    %566 = vmatpush1.xpose.msra.mxu0 0.0
    %567 = vmatprep.subr.mxu0 0.0
    %568 = vmatpush1.xpose.msra.mxu0 0.0
    %569 = vmatprep.subr.mxu0 0.0
    %570 = vmatpush1.xpose.msra.mxu0 0.0
    %571 = vmatprep.subr.mxu0 0.0
    %572 = vmatpush1.xpose.msra.mxu0 0.0
    %573 = vmatprep.subr.mxu0 0.0
    %574 = vmatpush1.xpose.msra.mxu0 0.0
    %575 = vmatprep.subr.mxu0 0.0
    %576 = vmatpush1.xpose.msra.mxu0 0.0
    %577 = vmatprep.subr.mxu0 0.0
    %578 = vmatpush1.xpose.msra.mxu0 0.0
    %579 = vmatprep.subr.mxu0 0.0
    %580 = vmatpush1.xpose.msra.mxu0 0.0
    %581 = vmatprep.mubr.f32.mxu0 0.0
    %582 = vmatmul.mubr.f32.gmra.mrb[0].mxu0 %v504
    %v583 = vpop.f32.mrb[0].mxu0
    %v584 = vadd.f32 0.0, %v583
    %v585 = vpop.f32.mrb[0].mxu0
    %586 = vmatprep.mubr.f32.mxu0 0.0
    %587 = vmatmul.mubr.f32.gmra.mrb[0].mxu0 %v505
    %v588 = vpop.f32.mrb[0].mxu0
    %v589 = vadd.f32 0.0, %v588
    %v590 = vpop.f32.mrb[0].mxu0
    %591 = vmatprep.mubr.f32.mxu0 0.0
    %592 = vmatmul.mubr.f32.gmra.mrb[0].mxu0 %v506
    %v593 = vpop.f32.mrb[0].mxu0
    %v594 = vadd.f32 0.0, %v593
    %v595 = vpop.f32.mrb[0].mxu0
    %596 = vmatprep.mubr.f32.mxu0 0.0
    %597 = vmatmul.mubr.f32.gmra.mrb[0].mxu0 %v507
    %v598 = vpop.f32.mrb[0].mxu0
    %v599 = vadd.f32 0.0, %v598
    %v600 = vpop.f32.mrb[0].mxu0
    %601 = vmatprep.mubr.f32.mxu0 0.0
    %602 = vmatmul.mubr.f32.gmra.mrb[0].mxu0 %v508
    %v603 = vpop.f32.mrb[0].mxu0
    %v604 = vadd.f32 0.0, %v603
    %v605 = vpop.f32.mrb[0].mxu0
    %606 = vdwg.mxu0
    %vm607 = vcmask 39936
    %v608 = vsel %vm607, %v584, 0.0
    %609 = vadd.xlane.f32.xlu0 %v608
    %v610 = vpop.xlane.xlu0 %609
    %v611 = vsel %vm607, %v589, 0.0
    %612 = vadd.xlane.f32.xlu0 %v611
    %v613 = vpop.xlane.xlu0 %612
    %v614 = vsel %vm607, %v594, 0.0
    %615 = vadd.xlane.f32.xlu0 %v614
    %v616 = vpop.xlane.xlu0 %615
    %v617 = vsel %vm607, %v599, 0.0
    %618 = vadd.xlane.f32.xlu0 %v617
    %v619 = vpop.xlane.xlu0 %618
    %v620 = vsel %vm607, %v604, 0.0
    %621 = vadd.xlane.f32.xlu0 %v620
    %v622 = vpop.xlane.xlu0 %621
    %v623 = vsub.f32 %v610, %v584
    %v624 = vsub.f32 %v613, %v589
    %v625 = vsub.f32 %v616, %v594
    %v626 = vsub.f32 %v619, %v599
    %v627 = vsub.f32 %v622, %v604
    %v628 = vmul.f32 %v623, 0.25
    %v629 = vmul.f32 %v624, 0.25
    %v630 = vmul.f32 %v625, 0.25
    %v631 = vmul.f32 %v626, 0.25
    %v632 = vmul.f32 %v627, 0.25
    %v633 = vlaneseq
    %v634 = vshrl.u32 %v633, 7
    %v635 = vadd.s32 %v634, 8
    %v636 = vadd.s32 %v634, 16
    %v637 = vadd.s32 %v634, 24
    %v638 = vadd.s32 %v634, 32
    %vm639 = vcmp.lt.s32.totalorder %v634, 8
    %vm640 = vcmp.lt.s32.totalorder %v635, 8
    %vm641 = vcmp.lt.s32.totalorder %v636, 8
    %vm642 = vcmp.lt.s32.totalorder %v637, 8
    %vm643 = vcmp.lt.s32.totalorder %v638, 8
    %v644 = vsel %vm639, %v584, %v628
    %v645 = vsel %vm640, %v589, %v629
    %v646 = vsel %vm641, %v594, %v630
    %v647 = vsel %vm642, %v599, %v631
    %v648 = vsel %vm643, %v604, %v632
    %650 = vset.pattern.permute.xlu0 0
    %651 = vperm.xlu0 %650, %v644
    %v652 = vpop.permute.xlu0 %651
    %655 = vset.pattern.permute.xlu0 0
    %656 = vperm.xlu0 %655, %v645
    %v657 = vpop.permute.xlu0 %656
    %660 = vset.pattern.permute.xlu0 0
    %661 = vperm.xlu0 %660, %v646
    %v662 = vpop.permute.xlu0 %661
    %665 = vset.pattern.permute.xlu0 0
    %666 = vperm.xlu0 %665, %v647
    %v667 = vpop.permute.xlu0 %666
    %670 = vset.pattern.permute.xlu0 0
    %671 = vperm.xlu0 %670, %v648
    %v672 = vpop.permute.xlu0 %671
    %v674 = vmul.f32 %v306, %v652
    %v675 = vmul.f32 %v307, %v657
    %v676 = vmul.f32 %v308, %v662
    %v677 = vmul.f32 %v309, %v667
    %v678 = vmul.f32 %v310, %v672
    %v679 = vrot.slane %v674, 4
    %v680 = vmax.f32 %v674, %v679
    %v681 = vrot.slane %v680, 2
    %v682 = vmax.f32 %v680, %v681
    %v683 = vrot.slane %v682, 1
    %v684 = vmax.f32 %v682, %v683
    %v685 = vrot.slane %v675, 4
    %v686 = vmax.f32 %v675, %v685
    %v687 = vrot.slane %v686, 2
    %v688 = vmax.f32 %v686, %v687
    %v689 = vrot.slane %v688, 1
    %v690 = vmax.f32 %v688, %v689
    %v691 = vrot.slane %v676, 4
    %v692 = vmax.f32 %v676, %v691
    %v693 = vrot.slane %v692, 2
    %v694 = vmax.f32 %v692, %v693
    %v695 = vrot.slane %v694, 1
    %v696 = vmax.f32 %v694, %v695
    %v697 = vrot.slane %v677, 4
    %v698 = vmax.f32 %v677, %v697
    %v699 = vrot.slane %v698, 2
    %v700 = vmax.f32 %v698, %v699
    %v701 = vrot.slane %v700, 1
    %v702 = vmax.f32 %v700, %v701
    %v703 = vrot.slane %v678, 4
    %v704 = vmax.f32 %v678, %v703
    %v705 = vrot.slane %v704, 2
    %v706 = vmax.f32 %v704, %v705
    %v707 = vrot.slane %v706, 1
    %v708 = vmax.f32 %v706, %v707
    %v709 = vld [vmem:[%s4 + $0x1] sm:$0x1]
    %v710 = vld [vmem:[%s4 + $0x2] sm:$0x1]
    %v711 = vld [vmem:[%s4 + $0x3] sm:$0x1]
    %v712 = vld [vmem:[%s4 + $0x4] sm:$0x1]
    %vm718 = vcmask 1041409
    %v719 = vsel %vm718, %v690, %v684
    %vm720 = vcmask 1042434
    %v721 = vsel %vm720, %v696, %v719
    %vm722 = vcmask 1043459
    %v723 = vsel %vm722, %v702, %v721
    %vm724 = vcmask 1044484
    %v725 = vsel %vm724, %v708, %v723
    %727 = vmatprep.subr.mxu0 0.0
    %728 = vmatpush1.xpose.msra.mxu0 %v725
    %729 = vmatprep.subr.mxu0 0.0
    %730 = vmatpush1.xpose.msra.mxu0 0.0
    %731 = vmatprep.subr.mxu0 0.0
    %732 = vmatpush1.xpose.msra.mxu0 0.0
    %733 = vmatprep.subr.mxu0 0.0
    %734 = vmatpush1.xpose.msra.mxu0 0.0
    %735 = vmatprep.subr.mxu0 0.0
    %736 = vmatpush1.xpose.msra.mxu0 0.0
    %737 = vmatprep.subr.mxu0 0.0
    %738 = vmatpush1.xpose.msra.mxu0 0.0
    %739 = vmatprep.subr.mxu0 0.0
    %740 = vmatpush1.xpose.msra.mxu0 0.0
    %741 = vmatprep.subr.mxu0 0.0
    %742 = vmatpush1.xpose.msra.mxu0 0.0
    %743 = vmatprep.subr.mxu0 0.0
    %744 = vmatpush1.xpose.msra.mxu0 0.0
    %745 = vmatprep.subr.mxu0 0.0
    %746 = vmatpush1.xpose.msra.mxu0 0.0
    %747 = vmatprep.subr.mxu0 0.0
    %748 = vmatpush1.xpose.msra.mxu0 0.0
    %749 = vmatprep.subr.mxu0 0.0
    %750 = vmatpush1.xpose.msra.mxu0 0.0
    %751 = vmatprep.subr.mxu0 0.0
    %752 = vmatpush1.xpose.msra.mxu0 0.0
    %753 = vmatprep.subr.mxu0 0.0
    %754 = vmatpush1.xpose.msra.mxu0 0.0
    %755 = vmatprep.subr.mxu0 0.0
    %756 = vmatpush1.xpose.msra.mxu0 0.0
    %757 = vmatprep.subr.mxu0 0.0
    %758 = vmatpush1.xpose.msra.mxu0 0.0
    %759 = vmatprep.subr.mxu0 0.0
    %760 = vmatpush1.xpose.msra.mxu0 0.0
    %761 = vmatprep.subr.mxu0 0.0
    %762 = vmatpush1.xpose.msra.mxu0 0.0
    %763 = vmatprep.subr.mxu0 0.0
    %764 = vmatpush1.xpose.msra.mxu0 0.0
    %765 = vmatprep.subr.mxu0 0.0
    %766 = vmatpush1.xpose.msra.mxu0 0.0
    %767 = vmatprep.subr.mxu0 0.0
    %768 = vmatpush1.xpose.msra.mxu0 0.0
    %769 = vmatprep.subr.mxu0 0.0
    %770 = vmatpush1.xpose.msra.mxu0 0.0
    %771 = vmatprep.subr.mxu0 0.0
    %772 = vmatpush1.xpose.msra.mxu0 0.0
    %773 = vmatprep.subr.mxu0 0.0
    %774 = vmatpush1.xpose.msra.mxu0 0.0
    %775 = vmatprep.subr.mxu0 0.0
    %776 = vmatpush1.xpose.msra.mxu0 0.0
    %777 = vmatprep.subr.mxu0 0.0
    %778 = vmatpush1.xpose.msra.mxu0 0.0
    %779 = vmatprep.subr.mxu0 0.0
    %780 = vmatpush1.xpose.msra.mxu0 0.0
    %781 = vmatprep.subr.mxu0 0.0
    %782 = vmatpush1.xpose.msra.mxu0 0.0
    %783 = vmatprep.subr.mxu0 0.0
    %784 = vmatpush1.xpose.msra.mxu0 0.0
    %785 = vmatprep.subr.mxu0 0.0
    %786 = vmatpush1.xpose.msra.mxu0 0.0
    %787 = vmatprep.subr.mxu0 0.0
    %788 = vmatpush1.xpose.msra.mxu0 0.0
    %789 = vmatprep.subr.mxu0 0.0
    %790 = vmatpush1.xpose.msra.mxu0 0.0
    %791 = vmatprep.mubr.f32.mxu0 0.0
    %792 = vmatmul.mubr.f32.gmra.mrb[0].mxu0 %v311
    %v793 = vpop.f32.mrb[0].mxu0
    %v794 = vadd.f32 0.0, %v793
    %v795 = vpop.f32.mrb[0].mxu0
    %796 = vmatprep.mubr.f32.mxu0 0.0
    %797 = vmatmul.mubr.f32.gmra.mrb[0].mxu0 %v312
    %v798 = vpop.f32.mrb[0].mxu0
    %v799 = vadd.f32 0.0, %v798
    %v800 = vpop.f32.mrb[0].mxu0
    %801 = vdwg.mxu0
    %v802 = vmul.f32 %v794, 0.17677669
    %v803 = vmul.f32 %v799, 0.17677669
    %v804 = vsel %vm607, %v802, -inf
    %805 = vmax.xlane.f32.xlu0 %v804
    %v806 = vpop.xlane.xlu0 %805
    %v807 = vsel %vm607, %v803, -inf
    %808 = vmax.xlane.f32.xlu0 %v807
    %v809 = vpop.xlane.xlu0 %808
    %v810 = vsub.f32 %v802, %v806
    %v811 = vsub.f32 %v803, %v809
    %v812 = vmul.f32 %v810, 1.442695
    %v813 = vpow.pop %v812
    %v814 = vmul.f32 %v811, 1.442695
    %v815 = vpow.pop %v814
    %v816 = vsel %vm607, %v813, 0.0
    %817 = vadd.xlane.f32.xlu0 %v816
    %v818 = vpop.xlane.xlu0 %817
    %v819 = vsel %vm607, %v815, 0.0
    %820 = vadd.xlane.f32.xlu0 %v819
    %v821 = vpop.xlane.xlu0 %820
    %v822 = vrcp.pop %v818
    %v823 = vrcp.pop %v821
    %v824 = vmul.f32 %v813, %v822
    %v825 = vmul.f32 %v815, %v823
    %vm826 = vcmp.ne.s32.totalorder %v59, 1
    %v827 = vsel %vm826, 1, 0
    %vm828 = vcmp.eq.s32.totalorder %v827, 1
    %v829 = vsel %vm828, %v802, -1e+30
    %v830 = vsel %vm828, %v803, -1e+30
    %v831 = vsel %vm607, %v829, -inf
    %832 = vmax.xlane.f32.xlu0 %v831
    %v833 = vpop.xlane.xlu0 %832
    %v834 = vsel %vm607, %v830, -inf
    %835 = vmax.xlane.f32.xlu0 %v834
    %v836 = vpop.xlane.xlu0 %835
    %v837 = vsub.f32 %v829, %v833
    %v838 = vsub.f32 %v830, %v836
    %v839 = vmul.f32 %v837, 1.442695
    %v840 = vpow.pop %v839
    %v841 = vmul.f32 %v838, 1.442695
    %v842 = vpow.pop %v841
    %v843 = vsel %vm607, %v840, 0.0
    %844 = vadd.xlane.f32.xlu0 %v843
    %v845 = vpop.xlane.xlu0 %844
    %v846 = vsel %vm607, %v842, 0.0
    %847 = vadd.xlane.f32.xlu0 %v846
    %v848 = vpop.xlane.xlu0 %847
    %v849 = vrcp.pop %v845
    %v850 = vrcp.pop %v848
    %v851 = vmul.f32 %v840, %v849
    %v852 = vmul.f32 %v842, %v850
    %v854 = vsel %vm607, %v824, 0
    %v857 = vsel %vm607, %v825, 0
    %v859 = vsel %vm510, %v725, 0
    %861 = vmatprep.subr.mxu0 0.0
    %862 = vmatpush1.msra.mxu0 %v859
    %863 = vmatprep.subr.mxu0 0.0
    %864 = vmatpush1.msra.mxu0 0.0
    %865 = vmatprep.subr.mxu0 0.0
    %866 = vmatpush1.msra.mxu0 0.0
    %867 = vmatprep.subr.mxu0 0.0
    %868 = vmatpush1.msra.mxu0 0.0
    %869 = vmatprep.subr.mxu0 0.0
    %870 = vmatpush1.msra.mxu0 0.0
    %871 = vmatprep.subr.mxu0 0.0
    %872 = vmatpush1.msra.mxu0 0.0
    %873 = vmatprep.subr.mxu0 0.0
    %874 = vmatpush1.msra.mxu0 0.0
    %875 = vmatprep.subr.mxu0 0.0
    %876 = vmatpush1.msra.mxu0 0.0
    %877 = vmatprep.subr.mxu0 0.0
    %878 = vmatpush1.msra.mxu0 0.0
    %879 = vmatprep.subr.mxu0 0.0
    %880 = vmatpush1.msra.mxu0 0.0
    %881 = vmatprep.subr.mxu0 0.0
    %882 = vmatpush1.msra.mxu0 0.0
    %883 = vmatprep.subr.mxu0 0.0
    %884 = vmatpush1.msra.mxu0 0.0
    %885 = vmatprep.subr.mxu0 0.0
    %886 = vmatpush1.msra.mxu0 0.0
    %887 = vmatprep.subr.mxu0 0.0
    %888 = vmatpush1.msra.mxu0 0.0
    %889 = vmatprep.subr.mxu0 0.0
    %890 = vmatpush1.msra.mxu0 0.0
    %891 = vmatprep.subr.mxu0 0.0
    %892 = vmatpush1.msra.mxu0 0.0
    %893 = vmatprep.subr.mxu0 0.0
    %894 = vmatpush1.msra.mxu0 0.0
    %895 = vmatprep.subr.mxu0 0.0
    %896 = vmatpush1.msra.mxu0 0.0
    %897 = vmatprep.subr.mxu0 0.0
    %898 = vmatpush1.msra.mxu0 0.0
    %899 = vmatprep.subr.mxu0 0.0
    %900 = vmatpush1.msra.mxu0 0.0
    %901 = vmatprep.subr.mxu0 0.0
    %902 = vmatpush1.msra.mxu0 0.0
    %903 = vmatprep.subr.mxu0 0.0
    %904 = vmatpush1.msra.mxu0 0.0
    %905 = vmatprep.subr.mxu0 0.0
    %906 = vmatpush1.msra.mxu0 0.0
    %907 = vmatprep.subr.mxu0 0.0
    %908 = vmatpush1.msra.mxu0 0.0
    %909 = vmatprep.subr.mxu0 0.0
    %910 = vmatpush1.msra.mxu0 0.0
    %911 = vmatprep.subr.mxu0 0.0
    %912 = vmatpush1.msra.mxu0 0.0
    %913 = vmatprep.subr.mxu0 0.0
    %914 = vmatpush1.msra.mxu0 0.0
    %915 = vmatprep.subr.mxu0 0.0
    %916 = vmatpush1.msra.mxu0 0.0
    %917 = vmatprep.subr.mxu0 0.0
    %918 = vmatpush1.msra.mxu0 0.0
    %919 = vmatprep.subr.mxu0 0.0
    %920 = vmatpush1.msra.mxu0 0.0
    %921 = vmatprep.subr.mxu0 0.0
    %922 = vmatpush1.msra.mxu0 0.0
    %923 = vmatprep.subr.mxu0 0.0
    %924 = vmatpush1.msra.mxu0 0.0
    %925 = vmatprep.mubr.f32.mxu0 0.0
    %926 = vmatmul.mubr.f32.gmra.mrb[0].mxu0 %v854
    %v927 = vpop.f32.mrb[0].mxu0
    %v928 = vadd.f32 0.0, %v927
    %v929 = vpop.f32.mrb[0].mxu0
    %930 = vmatprep.mubr.f32.mxu0 0.0
    %931 = vmatmul.mubr.f32.gmra.mrb[0].mxu0 %v857
    %v932 = vpop.f32.mrb[0].mxu0
    %v933 = vadd.f32 0.0, %v932
    %v934 = vpop.f32.mrb[0].mxu0
    %935 = vdwg.mxu0
    %v936 = vadd.f32 %v311, %v928
    %v937 = vadd.f32 %v312, %v933
    %v939 = vsel %vm607, %v851, 0
    %v942 = vsel %vm607, %v852, 0
    %944 = vmatprep.subr.mxu0 0.0
    %945 = vmatpush1.msra.mxu0 %v859
    %946 = vmatprep.subr.mxu0 0.0
    %947 = vmatpush1.msra.mxu0 0.0
    %948 = vmatprep.subr.mxu0 0.0
    %949 = vmatpush1.msra.mxu0 0.0
    %950 = vmatprep.subr.mxu0 0.0
    %951 = vmatpush1.msra.mxu0 0.0
    %952 = vmatprep.subr.mxu0 0.0
    %953 = vmatpush1.msra.mxu0 0.0
    %954 = vmatprep.subr.mxu0 0.0
    %955 = vmatpush1.msra.mxu0 0.0
    %956 = vmatprep.subr.mxu0 0.0
    %957 = vmatpush1.msra.mxu0 0.0
    %958 = vmatprep.subr.mxu0 0.0
    %959 = vmatpush1.msra.mxu0 0.0
    %960 = vmatprep.subr.mxu0 0.0
    %961 = vmatpush1.msra.mxu0 0.0
    %962 = vmatprep.subr.mxu0 0.0
    %963 = vmatpush1.msra.mxu0 0.0
    %964 = vmatprep.subr.mxu0 0.0
    %965 = vmatpush1.msra.mxu0 0.0
    %966 = vmatprep.subr.mxu0 0.0
    %967 = vmatpush1.msra.mxu0 0.0
    %968 = vmatprep.subr.mxu0 0.0
    %969 = vmatpush1.msra.mxu0 0.0
    %970 = vmatprep.subr.mxu0 0.0
    %971 = vmatpush1.msra.mxu0 0.0
    %972 = vmatprep.subr.mxu0 0.0
    %973 = vmatpush1.msra.mxu0 0.0
    %974 = vmatprep.subr.mxu0 0.0
    %975 = vmatpush1.msra.mxu0 0.0
    %976 = vmatprep.subr.mxu0 0.0
    %977 = vmatpush1.msra.mxu0 0.0
    %978 = vmatprep.subr.mxu0 0.0
    %979 = vmatpush1.msra.mxu0 0.0
    %980 = vmatprep.subr.mxu0 0.0
    %981 = vmatpush1.msra.mxu0 0.0
    %982 = vmatprep.subr.mxu0 0.0
    %983 = vmatpush1.msra.mxu0 0.0
    %984 = vmatprep.subr.mxu0 0.0
    %985 = vmatpush1.msra.mxu0 0.0
    %986 = vmatprep.subr.mxu0 0.0
    %987 = vmatpush1.msra.mxu0 0.0
    %988 = vmatprep.subr.mxu0 0.0
    %989 = vmatpush1.msra.mxu0 0.0
    %990 = vmatprep.subr.mxu0 0.0
    %991 = vmatpush1.msra.mxu0 0.0
    %992 = vmatprep.subr.mxu0 0.0
    %993 = vmatpush1.msra.mxu0 0.0
    %994 = vmatprep.subr.mxu0 0.0
    %995 = vmatpush1.msra.mxu0 0.0
    %996 = vmatprep.subr.mxu0 0.0
    %997 = vmatpush1.msra.mxu0 0.0
    %998 = vmatprep.subr.mxu0 0.0
    %999 = vmatpush1.msra.mxu0 0.0
    %1000 = vmatprep.subr.mxu0 0.0
    %1001 = vmatpush1.msra.mxu0 0.0
    %1002 = vmatprep.subr.mxu0 0.0
    %1003 = vmatpush1.msra.mxu0 0.0
    %1004 = vmatprep.subr.mxu0 0.0
    %1005 = vmatpush1.msra.mxu0 0.0
    %1006 = vmatprep.subr.mxu0 0.0
    %1007 = vmatpush1.msra.mxu0 0.0
    %1008 = vmatprep.mubr.f32.mxu0 0.0
    %1009 = vmatmul.mubr.f32.gmra.mrb[0].mxu0 %v939
    %v1010 = vpop.f32.mrb[0].mxu0
    %v1011 = vadd.f32 0.0, %v1010
    %v1012 = vpop.f32.mrb[0].mxu0
    %1013 = vmatprep.mubr.f32.mxu0 0.0
    %1014 = vmatmul.mubr.f32.gmra.mrb[0].mxu0 %v942
    %v1015 = vpop.f32.mrb[0].mxu0
    %v1016 = vadd.f32 0.0, %v1015
    %v1017 = vpop.f32.mrb[0].mxu0
    %1018 = vdwg.mxu0
    %v1019 = vadd.f32 %v311, %v1011
    %v1020 = vadd.f32 %v312, %v1016
    %1021 = vadd.xlane.f32.xlu0 %v936
    %v1022 = vpop.xlane.xlu0 %1021
    %1023 = vadd.xlane.f32.xlu0 %v937
    %v1024 = vpop.xlane.xlu0 %1023
    %v1025 = vmul.f32 %v1022, 0.03125
    %v1026 = vmul.f32 %v1024, 0.03125
    %v1027 = vmul.f32 %v936, %v936
    %v1028 = vmul.f32 %v937, %v937
    %1029 = vadd.xlane.f32.xlu0 %v1027
    %v1030 = vpop.xlane.xlu0 %1029
    %1031 = vadd.xlane.f32.xlu0 %v1028
    %v1032 = vpop.xlane.xlu0 %1031
    %v1033 = vmul.f32 %v1030, 0.03125
    %v1034 = vmul.f32 %v1032, 0.03125
    %v1035 = vmul.f32 %v1025, %v1025
    %v1036 = vmul.f32 %v1026, %v1026
    %v1037 = vsub.f32 %v1033, %v1035
    %v1038 = vsub.f32 %v1034, %v1036
    %v1039 = vmax.f32 %v1037, 0.0
    %v1040 = vmax.f32 %v1038, 0.0
    %v1041 = vsub.f32 %v936, %v1025
    %v1042 = vsub.f32 %v937, %v1026
    %v1043 = vadd.f32 %v1039, 1e-12
    %v1044 = vadd.f32 %v1040, 1e-12
    %v1045 = vrsqrt.pop %v1043
    %v1046 = vrsqrt.pop %v1044
    %v1047 = vmul.f32 %v1041, %v1045
    %v1048 = vmul.f32 %v1042, %v1046
    %v1049 = vlaneseq
    %v1050 = vshrl.u32 %v1049, 7
    %v1051 = vsub.s32 0, %v1050
    %v1052 = vrot.slane %v709, %v1051
    %v1053 = vmul.f32 %v1047, %v1052
    %v1054 = vmul.f32 %v1048, %v1052
    %v1055 = vlaneseq
    %v1056 = vshrl.u32 %v1055, 7
    %v1057 = vsub.s32 0, %v1056
    %v1058 = vrot.slane %v710, %v1057
    %v1059 = vadd.f32 %v1053, %v1058
    %v1060 = vadd.f32 %v1054, %v1058
    %v1061 = vrot.slane %v1059, 4
    %v1062 = vadd.f32 %v1059, %v1061
    %v1063 = vrot.slane %v1062, 2
    %v1064 = vadd.f32 %v1062, %v1063
    %v1065 = vrot.slane %v1064, 1
    %v1066 = vadd.f32 %v1064, %v1065
    %v1067 = vrot.slane %v1060, 4
    %v1068 = vadd.f32 %v1060, %v1067
    %v1069 = vrot.slane %v1068, 2
    %v1070 = vadd.f32 %v1068, %v1069
    %v1071 = vrot.slane %v1070, 1
    %v1072 = vadd.f32 %v1070, %v1071
    %v1073 = vmul.f32 %v1066, 0.125
    %v1074 = vmul.f32 %v1072, 0.125
    %1075 = vadd.xlane.f32.xlu0 %v1019
    %v1076 = vpop.xlane.xlu0 %1075
    %1077 = vadd.xlane.f32.xlu0 %v1020
    %v1078 = vpop.xlane.xlu0 %1077
    %v1079 = vmul.f32 %v1076, 0.03125
    %v1080 = vmul.f32 %v1078, 0.03125
    %v1081 = vmul.f32 %v1019, %v1019
    %v1082 = vmul.f32 %v1020, %v1020
    %1083 = vadd.xlane.f32.xlu0 %v1081
    %v1084 = vpop.xlane.xlu0 %1083
    %1085 = vadd.xlane.f32.xlu0 %v1082
    %v1086 = vpop.xlane.xlu0 %1085
    %v1087 = vmul.f32 %v1084, 0.03125
    %v1088 = vmul.f32 %v1086, 0.03125
    %v1089 = vmul.f32 %v1079, %v1079
    %v1090 = vmul.f32 %v1080, %v1080
    %v1091 = vsub.f32 %v1087, %v1089
    %v1092 = vsub.f32 %v1088, %v1090
    %v1093 = vmax.f32 %v1091, 0.0
    %v1094 = vmax.f32 %v1092, 0.0
    %v1095 = vsub.f32 %v1019, %v1079
    %v1096 = vsub.f32 %v1020, %v1080
    %v1097 = vadd.f32 %v1093, 1e-12
    %v1098 = vadd.f32 %v1094, 1e-12
    %v1099 = vrsqrt.pop %v1097
    %v1100 = vrsqrt.pop %v1098
    %v1101 = vmul.f32 %v1095, %v1099
    %v1102 = vmul.f32 %v1096, %v1100
    %v1103 = vlaneseq
    %v1104 = vshrl.u32 %v1103, 7
    %v1105 = vsub.s32 0, %v1104
    %v1106 = vrot.slane %v711, %v1105
    %v1107 = vmul.f32 %v1101, %v1106
    %v1108 = vmul.f32 %v1102, %v1106
    %v1109 = vlaneseq
    %v1110 = vshrl.u32 %v1109, 7
    %v1111 = vsub.s32 0, %v1110
    %v1112 = vrot.slane %v712, %v1111
    %v1113 = vadd.f32 %v1107, %v1112
    %v1114 = vadd.f32 %v1108, %v1112
    %v1115 = vrot.slane %v1113, 4
    %v1116 = vadd.f32 %v1113, %v1115
    %v1117 = vrot.slane %v1116, 2
    %v1118 = vadd.f32 %v1116, %v1117
    %v1119 = vrot.slane %v1118, 1
    %v1120 = vadd.f32 %v1118, %v1119
    %v1121 = vrot.slane %v1114, 4
    %v1122 = vadd.f32 %v1114, %v1121
    %v1123 = vrot.slane %v1122, 2
    %v1124 = vadd.f32 %v1122, %v1123
    %v1125 = vrot.slane %v1124, 1
    %v1126 = vadd.f32 %v1124, %v1125
    %v1127 = vmul.f32 %v1120, 0.125
    %v1128 = vmul.f32 %v1126, 0.125
    %vm1129 = vcmp.ne.s32.totalorder %v634, 1
    %v1130 = vsel %vm1129, 1, 0
    %v1131 = vcvt.s32.f32 %v1130
    %1132 = vmatprep.subr.mxu0 0.0
    %1133 = vmatpush1.xpose.msra.mxu0 %v311
    %1134 = vmatprep.subr.mxu0 0.0
    %1135 = vmatpush1.xpose.msra.mxu0 0.0
    %1136 = vmatprep.subr.mxu0 0.0
    %1137 = vmatpush1.xpose.msra.mxu0 0.0
    %1138 = vmatprep.subr.mxu0 0.0
    %1139 = vmatpush1.xpose.msra.mxu0 0.0
    %1140 = vmatprep.subr.mxu0 0.0
    %1141 = vmatpush1.xpose.msra.mxu0 0.0
    %1142 = vmatprep.subr.mxu0 0.0
    %1143 = vmatpush1.xpose.msra.mxu0 0.0
    %1144 = vmatprep.subr.mxu0 0.0
    %1145 = vmatpush1.xpose.msra.mxu0 0.0
    %1146 = vmatprep.subr.mxu0 0.0
    %1147 = vmatpush1.xpose.msra.mxu0 0.0
    %1148 = vmatprep.subr.mxu0 0.0
    %1149 = vmatpush1.xpose.msra.mxu0 0.0
    %1150 = vmatprep.subr.mxu0 0.0
    %1151 = vmatpush1.xpose.msra.mxu0 0.0
    %1152 = vmatprep.subr.mxu0 0.0
    %1153 = vmatpush1.xpose.msra.mxu0 0.0
    %1154 = vmatprep.subr.mxu0 0.0
    %1155 = vmatpush1.xpose.msra.mxu0 0.0
    %1156 = vmatprep.subr.mxu0 0.0
    %1157 = vmatpush1.xpose.msra.mxu0 0.0
    %1158 = vmatprep.subr.mxu0 0.0
    %1159 = vmatpush1.xpose.msra.mxu0 0.0
    %1160 = vmatprep.subr.mxu0 0.0
    %1161 = vmatpush1.xpose.msra.mxu0 0.0
    %1162 = vmatprep.subr.mxu0 0.0
    %1163 = vmatpush1.xpose.msra.mxu0 0.0
    %1164 = vmatprep.subr.mxu0 0.0
    %1165 = vmatpush1.xpose.msra.mxu0 0.0
    %1166 = vmatprep.subr.mxu0 0.0
    %1167 = vmatpush1.xpose.msra.mxu0 0.0
    %1168 = vmatprep.subr.mxu0 0.0
    %1169 = vmatpush1.xpose.msra.mxu0 0.0
    %1170 = vmatprep.subr.mxu0 0.0
    %1171 = vmatpush1.xpose.msra.mxu0 0.0
    %1172 = vmatprep.subr.mxu0 0.0
    %1173 = vmatpush1.xpose.msra.mxu0 0.0
    %1174 = vmatprep.subr.mxu0 0.0
    %1175 = vmatpush1.xpose.msra.mxu0 0.0
    %1176 = vmatprep.subr.mxu0 0.0
    %1177 = vmatpush1.xpose.msra.mxu0 0.0
    %1178 = vmatprep.subr.mxu0 0.0
    %1179 = vmatpush1.xpose.msra.mxu0 0.0
    %1180 = vmatprep.subr.mxu0 0.0
    %1181 = vmatpush1.xpose.msra.mxu0 0.0
    %1182 = vmatprep.subr.mxu0 0.0
    %1183 = vmatpush1.xpose.msra.mxu0 0.0
    %1184 = vmatprep.subr.mxu0 0.0
    %1185 = vmatpush1.xpose.msra.mxu0 0.0
    %1186 = vmatprep.subr.mxu0 0.0
    %1187 = vmatpush1.xpose.msra.mxu0 0.0
    %1188 = vmatprep.subr.mxu0 0.0
    %1189 = vmatpush1.xpose.msra.mxu0 0.0
    %1190 = vmatprep.subr.mxu0 0.0
    %1191 = vmatpush1.xpose.msra.mxu0 0.0
    %1192 = vmatprep.subr.mxu0 0.0
    %1193 = vmatpush1.xpose.msra.mxu0 0.0
    %1194 = vmatprep.subr.mxu0 0.0
    %1195 = vmatpush1.xpose.msra.mxu0 0.0
    %1196 = vmatprep.mubr.f32.mxu0 0.0
    %1197 = vmatmul.mubr.f32.gmra.mrb[0].mxu0 %v725
    %v1198 = vpop.f32.mrb[0].mxu0
    %v1199 = vadd.f32 0.0, %v1198
    %v1200 = vpop.f32.mrb[0].mxu0
    %1201 = vdwg.mxu0
    %v1202 = vmul.f32 %v1199, 0.17677669
    %vm1203 = vcmask 61440
    %v1204 = vsel %vm1203, %v1202, -inf
    %1205 = vmax.xlane.f32.xlu0 %v1204
    %v1206 = vpop.xlane.xlu0 %1205
    %v1207 = vsub.f32 %v1202, %v1206
    %v1208 = vmul.f32 %v1207, 1.442695
    %v1209 = vpow.pop %v1208
    %v1210 = vsel %vm1203, %v1209, 0.0
    %1211 = vadd.xlane.f32.xlu0 %v1210
    %v1212 = vpop.xlane.xlu0 %1211
    %v1213 = vrcp.pop %v1212
    %v1214 = vmul.f32 %v1209, %v1213
    %vm1215 = vcmask 64512
    %v1217 = vsel %vm1215, %v1214, 0
    %1219 = vmatprep.subr.mxu0 0.0
    %1220 = vmatpush1.msra.mxu0 %v311
    %1221 = vmatprep.subr.mxu0 0.0
    %1222 = vmatpush1.msra.mxu0 0.0
    %1223 = vmatprep.subr.mxu0 0.0
    %1224 = vmatpush1.msra.mxu0 0.0
    %1225 = vmatprep.subr.mxu0 0.0
    %1226 = vmatpush1.msra.mxu0 0.0
    %1227 = vmatprep.subr.mxu0 0.0
    %1228 = vmatpush1.msra.mxu0 0.0
    %1229 = vmatprep.subr.mxu0 0.0
    %1230 = vmatpush1.msra.mxu0 0.0
    %1231 = vmatprep.subr.mxu0 0.0
    %1232 = vmatpush1.msra.mxu0 0.0
    %1233 = vmatprep.subr.mxu0 0.0
    %1234 = vmatpush1.msra.mxu0 0.0
    %1235 = vmatprep.subr.mxu0 0.0
    %1236 = vmatpush1.msra.mxu0 0.0
    %1237 = vmatprep.subr.mxu0 0.0
    %1238 = vmatpush1.msra.mxu0 0.0
    %1239 = vmatprep.subr.mxu0 0.0
    %1240 = vmatpush1.msra.mxu0 0.0
    %1241 = vmatprep.subr.mxu0 0.0
    %1242 = vmatpush1.msra.mxu0 0.0
    %1243 = vmatprep.subr.mxu0 0.0
    %1244 = vmatpush1.msra.mxu0 0.0
    %1245 = vmatprep.subr.mxu0 0.0
    %1246 = vmatpush1.msra.mxu0 0.0
    %1247 = vmatprep.subr.mxu0 0.0
    %1248 = vmatpush1.msra.mxu0 0.0
    %1249 = vmatprep.subr.mxu0 0.0
    %1250 = vmatpush1.msra.mxu0 0.0
    %1251 = vmatprep.subr.mxu0 0.0
    %1252 = vmatpush1.msra.mxu0 0.0
    %1253 = vmatprep.subr.mxu0 0.0
    %1254 = vmatpush1.msra.mxu0 0.0
    %1255 = vmatprep.subr.mxu0 0.0
    %1256 = vmatpush1.msra.mxu0 0.0
    %1257 = vmatprep.subr.mxu0 0.0
    %1258 = vmatpush1.msra.mxu0 0.0
    %1259 = vmatprep.subr.mxu0 0.0
    %1260 = vmatpush1.msra.mxu0 0.0
    %1261 = vmatprep.subr.mxu0 0.0
    %1262 = vmatpush1.msra.mxu0 0.0
    %1263 = vmatprep.subr.mxu0 0.0
    %1264 = vmatpush1.msra.mxu0 0.0
    %1265 = vmatprep.subr.mxu0 0.0
    %1266 = vmatpush1.msra.mxu0 0.0
    %1267 = vmatprep.subr.mxu0 0.0
    %1268 = vmatpush1.msra.mxu0 0.0
    %1269 = vmatprep.subr.mxu0 0.0
    %1270 = vmatpush1.msra.mxu0 0.0
    %1271 = vmatprep.subr.mxu0 0.0
    %1272 = vmatpush1.msra.mxu0 0.0
    %1273 = vmatprep.subr.mxu0 0.0
    %1274 = vmatpush1.msra.mxu0 0.0
    %1275 = vmatprep.subr.mxu0 0.0
    %1276 = vmatpush1.msra.mxu0 0.0
    %1277 = vmatprep.subr.mxu0 0.0
    %1278 = vmatpush1.msra.mxu0 0.0
    %1279 = vmatprep.subr.mxu0 0.0
    %1280 = vmatpush1.msra.mxu0 0.0
    %1281 = vmatprep.subr.mxu0 0.0
    %1282 = vmatpush1.msra.mxu0 0.0
    %1283 = vmatprep.mubr.f32.mxu0 0.0
    %1284 = vmatmul.mubr.f32.gmra.mrb[0].mxu0 %v1217
    %v1285 = vpop.f32.mrb[0].mxu0
    %v1286 = vadd.f32 0.0, %v1285
    %v1287 = vpop.f32.mrb[0].mxu0
    %1288 = vdwg.mxu0
    %v1290 = vrot.slane %v1286, 1
    %v1291 = vrot.slane %v1286, 2
    %v1292 = vrot.slane %v1286, 3
    %v1293 = vrot.slane %v1286, 4
    %v1299 = vadd.f32 %v684, %v1286
    %v1300 = vadd.f32 %v690, %v1290
    %v1301 = vadd.f32 %v696, %v1291
    %v1302 = vadd.f32 %v702, %v1292
    %v1303 = vadd.f32 %v708, %v1293
    %v1309 = vrot.slane %v1300, 7
    %v1310 = vsel %vm718, %v1309, %v1299
    %v1311 = vrot.slane %v1301, 6
    %v1312 = vsel %vm720, %v1311, %v1310
    %v1313 = vrot.slane %v1302, 5
    %v1314 = vsel %vm722, %v1313, %v1312
    %v1315 = vrot.slane %v1303, 4
    %v1316 = vsel %vm724, %v1315, %v1314
    %v1318 = vsel %vm510, %v1316, 0.0
    %1319 = vadd.xlane.f32.xlu0 %v1318
    %v1320 = vpop.xlane.xlu0 %1319
    %v1321 = vmul.f32 %v1320, 0.03125
    %v1322 = vmul.f32 %v1299, %v1299
    %v1323 = vmul.f32 %v1300, %v1300
    %v1324 = vmul.f32 %v1301, %v1301
    %v1325 = vmul.f32 %v1302, %v1302
    %v1326 = vmul.f32 %v1303, %v1303
    %v1332 = vrot.slane %v1323, 7
    %v1333 = vsel %vm718, %v1332, %v1322
    %v1334 = vrot.slane %v1324, 6
    %v1335 = vsel %vm720, %v1334, %v1333
    %v1336 = vrot.slane %v1325, 5
    %v1337 = vsel %vm722, %v1336, %v1335
    %v1338 = vrot.slane %v1326, 4
    %v1339 = vsel %vm724, %v1338, %v1337
    %v1341 = vsel %vm510, %v1339, 0.0
    %1342 = vadd.xlane.f32.xlu0 %v1341
    %v1343 = vpop.xlane.xlu0 %1342
    %v1344 = vmul.f32 %v1343, 0.03125
    %v1345 = vmul.f32 %v1321, %v1321
    %v1346 = vsub.f32 %v1344, %v1345
    %v1347 = vmax.f32 %v1346, 0.0
    %v1349 = vrot.slane %v1321, 1
    %v1350 = vrot.slane %v1321, 2
    %v1351 = vrot.slane %v1321, 3
    %v1352 = vrot.slane %v1321, 4
    %v1358 = vsub.f32 %v1299, %v1321
    %v1359 = vsub.f32 %v1300, %v1349
    %v1360 = vsub.f32 %v1301, %v1350
    %v1361 = vsub.f32 %v1302, %v1351
    %v1362 = vsub.f32 %v1303, %v1352
    %v1363 = vadd.f32 %v1347, 1e-12
    %v1364 = vrsqrt.pop %v1363
    %v1366 = vrot.slane %v1364, 1
    %v1367 = vrot.slane %v1364, 2
    %v1368 = vrot.slane %v1364, 3
    %v1369 = vrot.slane %v1364, 4
    %v1375 = vmul.f32 %v1358, %v1364
    %v1376 = vmul.f32 %v1359, %v1366
    %v1377 = vmul.f32 %v1360, %v1367
    %v1378 = vmul.f32 %v1361, %v1368
    %v1379 = vmul.f32 %v1362, %v1369
    %v1380 = vmul.f32 %v1375, %v1052
    %v1381 = vmul.f32 %v1376, %v1052
    %v1382 = vmul.f32 %v1377, %v1052
    %v1383 = vmul.f32 %v1378, %v1052
    %v1384 = vmul.f32 %v1379, %v1052
    %v1385 = vadd.f32 %v1380, %v1058
    %v1386 = vadd.f32 %v1381, %v1058
    %v1387 = vadd.f32 %v1382, %v1058
    %v1388 = vadd.f32 %v1383, %v1058
    %v1389 = vadd.f32 %v1384, %v1058
    %v1395 = vrot.slane %v1386, 7
    %v1396 = vsel %vm718, %v1395, %v1385
    %v1397 = vrot.slane %v1387, 6
    %v1398 = vsel %vm720, %v1397, %v1396
    %v1399 = vrot.slane %v1388, 5
    %v1400 = vsel %vm722, %v1399, %v1398
    %v1401 = vrot.slane %v1389, 4
    %v1402 = vsel %vm724, %v1401, %v1400
    %v1404 = vsel %vm510, %v1402, 0.0
    %v1405 = vrot.slane %v1404, 4
    %v1406 = vadd.f32 %v1404, %v1405
    %v1407 = vrot.slane %v1406, 2
    %v1408 = vadd.f32 %v1406, %v1407
    %v1409 = vrot.slane %v1408, 1
    %v1410 = vadd.f32 %v1408, %v1409
    %v1411 = vmul.f32 %v1410, 0.2
    %v1412 = vmul.f32 %v1375, %v1106
    %v1413 = vmul.f32 %v1376, %v1106
    %v1414 = vmul.f32 %v1377, %v1106
    %v1415 = vmul.f32 %v1378, %v1106
    %v1416 = vmul.f32 %v1379, %v1106
    %v1417 = vadd.f32 %v1412, %v1112
    %v1418 = vadd.f32 %v1413, %v1112
    %v1419 = vadd.f32 %v1414, %v1112
    %v1420 = vadd.f32 %v1415, %v1112
    %v1421 = vadd.f32 %v1416, %v1112
    %v1423 = vrot.slane %v1131, 1
    %v1424 = vrot.slane %v1131, 2
    %v1425 = vrot.slane %v1131, 3
    %v1426 = vrot.slane %v1131, 4
    %v1432 = vmul.f32 %v1417, %v1131
    %v1433 = vmul.f32 %v1418, %v1423
    %v1434 = vmul.f32 %v1419, %v1424
    %v1435 = vmul.f32 %v1420, %v1425
    %v1436 = vmul.f32 %v1421, %v1426
    %v1442 = vrot.slane %v1433, 7
    %v1443 = vsel %vm718, %v1442, %v1432
    %v1444 = vrot.slane %v1434, 6
    %v1445 = vsel %vm720, %v1444, %v1443
    %v1446 = vrot.slane %v1435, 5
    %v1447 = vsel %vm722, %v1446, %v1445
    %v1448 = vrot.slane %v1436, 4
    %v1449 = vsel %vm724, %v1448, %v1447
    %v1451 = vsel %vm510, %v1449, 0.0
    %v1452 = vrot.slane %v1451, 4
    %v1453 = vadd.f32 %v1451, %v1452
    %v1454 = vrot.slane %v1453, 2
    %v1455 = vadd.f32 %v1453, %v1454
    %v1456 = vrot.slane %v1455, 1
    %v1457 = vadd.f32 %v1455, %v1456
    %v1458 = vmul.f32 %v1457, 0.25
    %1459 = vmatprep.subr.mxu0 0.0
    %1460 = vmatpush1.xpose.msra.mxu0 %v312
    %1461 = vmatprep.subr.mxu0 0.0
    %1462 = vmatpush1.xpose.msra.mxu0 0.0
    %1463 = vmatprep.subr.mxu0 0.0
    %1464 = vmatpush1.xpose.msra.mxu0 0.0
    %1465 = vmatprep.subr.mxu0 0.0
    %1466 = vmatpush1.xpose.msra.mxu0 0.0
    %1467 = vmatprep.subr.mxu0 0.0
    %1468 = vmatpush1.xpose.msra.mxu0 0.0
    %1469 = vmatprep.subr.mxu0 0.0
    %1470 = vmatpush1.xpose.msra.mxu0 0.0
    %1471 = vmatprep.subr.mxu0 0.0
    %1472 = vmatpush1.xpose.msra.mxu0 0.0
    %1473 = vmatprep.subr.mxu0 0.0
    %1474 = vmatpush1.xpose.msra.mxu0 0.0
    %1475 = vmatprep.subr.mxu0 0.0
    %1476 = vmatpush1.xpose.msra.mxu0 0.0
    %1477 = vmatprep.subr.mxu0 0.0
    %1478 = vmatpush1.xpose.msra.mxu0 0.0
    %1479 = vmatprep.subr.mxu0 0.0
    %1480 = vmatpush1.xpose.msra.mxu0 0.0
    %1481 = vmatprep.subr.mxu0 0.0
    %1482 = vmatpush1.xpose.msra.mxu0 0.0
    %1483 = vmatprep.subr.mxu0 0.0
    %1484 = vmatpush1.xpose.msra.mxu0 0.0
    %1485 = vmatprep.subr.mxu0 0.0
    %1486 = vmatpush1.xpose.msra.mxu0 0.0
    %1487 = vmatprep.subr.mxu0 0.0
    %1488 = vmatpush1.xpose.msra.mxu0 0.0
    %1489 = vmatprep.subr.mxu0 0.0
    %1490 = vmatpush1.xpose.msra.mxu0 0.0
    %1491 = vmatprep.subr.mxu0 0.0
    %1492 = vmatpush1.xpose.msra.mxu0 0.0
    %1493 = vmatprep.subr.mxu0 0.0
    %1494 = vmatpush1.xpose.msra.mxu0 0.0
    %1495 = vmatprep.subr.mxu0 0.0
    %1496 = vmatpush1.xpose.msra.mxu0 0.0
    %1497 = vmatprep.subr.mxu0 0.0
    %1498 = vmatpush1.xpose.msra.mxu0 0.0
    %1499 = vmatprep.subr.mxu0 0.0
    %1500 = vmatpush1.xpose.msra.mxu0 0.0
    %1501 = vmatprep.subr.mxu0 0.0
    %1502 = vmatpush1.xpose.msra.mxu0 0.0
    %1503 = vmatprep.subr.mxu0 0.0
    %1504 = vmatpush1.xpose.msra.mxu0 0.0
    %1505 = vmatprep.subr.mxu0 0.0
    %1506 = vmatpush1.xpose.msra.mxu0 0.0
    %1507 = vmatprep.subr.mxu0 0.0
    %1508 = vmatpush1.xpose.msra.mxu0 0.0
    %1509 = vmatprep.subr.mxu0 0.0
    %1510 = vmatpush1.xpose.msra.mxu0 0.0
    %1511 = vmatprep.subr.mxu0 0.0
    %1512 = vmatpush1.xpose.msra.mxu0 0.0
    %1513 = vmatprep.subr.mxu0 0.0
    %1514 = vmatpush1.xpose.msra.mxu0 0.0
    %1515 = vmatprep.subr.mxu0 0.0
    %1516 = vmatpush1.xpose.msra.mxu0 0.0
    %1517 = vmatprep.subr.mxu0 0.0
    %1518 = vmatpush1.xpose.msra.mxu0 0.0
    %1519 = vmatprep.subr.mxu0 0.0
    %1520 = vmatpush1.xpose.msra.mxu0 0.0
    %1521 = vmatprep.subr.mxu0 0.0
    %1522 = vmatpush1.xpose.msra.mxu0 0.0
    %1523 = vmatprep.mubr.f32.mxu0 0.0
    %1524 = vmatmul.mubr.f32.gmra.mrb[0].mxu0 %v725
    %v1525 = vpop.f32.mrb[0].mxu0
    %v1526 = vadd.f32 0.0, %v1525
    %v1527 = vpop.f32.mrb[0].mxu0
    %1528 = vdwg.mxu0
    %v1529 = vmul.f32 %v1526, 0.17677669
    %v1530 = vsel %vm1203, %v1529, -inf
    %1531 = vmax.xlane.f32.xlu0 %v1530
    %v1532 = vpop.xlane.xlu0 %1531
    %v1533 = vsub.f32 %v1529, %v1532
    %v1534 = vmul.f32 %v1533, 1.442695
    %v1535 = vpow.pop %v1534
    %v1536 = vsel %vm1203, %v1535, 0.0
    %1537 = vadd.xlane.f32.xlu0 %v1536
    %v1538 = vpop.xlane.xlu0 %1537
    %v1539 = vrcp.pop %v1538
    %v1540 = vmul.f32 %v1535, %v1539
    %v1542 = vsel %vm1215, %v1540, 0
    %1544 = vmatprep.subr.mxu0 0.0
    %1545 = vmatpush1.msra.mxu0 %v312
    %1546 = vmatprep.subr.mxu0 0.0
    %1547 = vmatpush1.msra.mxu0 0.0
    %1548 = vmatprep.subr.mxu0 0.0
    %1549 = vmatpush1.msra.mxu0 0.0
    %1550 = vmatprep.subr.mxu0 0.0
    %1551 = vmatpush1.msra.mxu0 0.0
    %1552 = vmatprep.subr.mxu0 0.0
    %1553 = vmatpush1.msra.mxu0 0.0
    %1554 = vmatprep.subr.mxu0 0.0
    %1555 = vmatpush1.msra.mxu0 0.0
    %1556 = vmatprep.subr.mxu0 0.0
    %1557 = vmatpush1.msra.mxu0 0.0
    %1558 = vmatprep.subr.mxu0 0.0
    %1559 = vmatpush1.msra.mxu0 0.0
    %1560 = vmatprep.subr.mxu0 0.0
    %1561 = vmatpush1.msra.mxu0 0.0
    %1562 = vmatprep.subr.mxu0 0.0
    %1563 = vmatpush1.msra.mxu0 0.0
    %1564 = vmatprep.subr.mxu0 0.0
    %1565 = vmatpush1.msra.mxu0 0.0
    %1566 = vmatprep.subr.mxu0 0.0
    %1567 = vmatpush1.msra.mxu0 0.0
    %1568 = vmatprep.subr.mxu0 0.0
    %1569 = vmatpush1.msra.mxu0 0.0
    %1570 = vmatprep.subr.mxu0 0.0
    %1571 = vmatpush1.msra.mxu0 0.0
    %1572 = vmatprep.subr.mxu0 0.0
    %1573 = vmatpush1.msra.mxu0 0.0
    %1574 = vmatprep.subr.mxu0 0.0
    %1575 = vmatpush1.msra.mxu0 0.0
    %1576 = vmatprep.subr.mxu0 0.0
    %1577 = vmatpush1.msra.mxu0 0.0
    %1578 = vmatprep.subr.mxu0 0.0
    %1579 = vmatpush1.msra.mxu0 0.0
    %1580 = vmatprep.subr.mxu0 0.0
    %1581 = vmatpush1.msra.mxu0 0.0
    %1582 = vmatprep.subr.mxu0 0.0
    %1583 = vmatpush1.msra.mxu0 0.0
    %1584 = vmatprep.subr.mxu0 0.0
    %1585 = vmatpush1.msra.mxu0 0.0
    %1586 = vmatprep.subr.mxu0 0.0
    %1587 = vmatpush1.msra.mxu0 0.0
    %1588 = vmatprep.subr.mxu0 0.0
    %1589 = vmatpush1.msra.mxu0 0.0
    %1590 = vmatprep.subr.mxu0 0.0
    %1591 = vmatpush1.msra.mxu0 0.0
    %1592 = vmatprep.subr.mxu0 0.0
    %1593 = vmatpush1.msra.mxu0 0.0
    %1594 = vmatprep.subr.mxu0 0.0
    %1595 = vmatpush1.msra.mxu0 0.0
    %1596 = vmatprep.subr.mxu0 0.0
    %1597 = vmatpush1.msra.mxu0 0.0
    %1598 = vmatprep.subr.mxu0 0.0
    %1599 = vmatpush1.msra.mxu0 0.0
    %1600 = vmatprep.subr.mxu0 0.0
    %1601 = vmatpush1.msra.mxu0 0.0
    %1602 = vmatprep.subr.mxu0 0.0
    %1603 = vmatpush1.msra.mxu0 0.0
    %1604 = vmatprep.subr.mxu0 0.0
    %1605 = vmatpush1.msra.mxu0 0.0
    %1606 = vmatprep.subr.mxu0 0.0
    %1607 = vmatpush1.msra.mxu0 0.0
    %1608 = vmatprep.mubr.f32.mxu0 0.0
    %1609 = vmatmul.mubr.f32.gmra.mrb[0].mxu0 %v1542
    %v1610 = vpop.f32.mrb[0].mxu0
    %v1611 = vadd.f32 0.0, %v1610
    %v1612 = vpop.f32.mrb[0].mxu0
    %1613 = vdwg.mxu0
    %v1615 = vrot.slane %v1611, 1
    %v1616 = vrot.slane %v1611, 2
    %v1617 = vrot.slane %v1611, 3
    %v1618 = vrot.slane %v1611, 4
    %v1624 = vadd.f32 %v684, %v1611
    %v1625 = vadd.f32 %v690, %v1615
    %v1626 = vadd.f32 %v696, %v1616
    %v1627 = vadd.f32 %v702, %v1617
    %v1628 = vadd.f32 %v708, %v1618
    %v1634 = vrot.slane %v1625, 7
    %v1635 = vsel %vm718, %v1634, %v1624
    %v1636 = vrot.slane %v1626, 6
    %v1637 = vsel %vm720, %v1636, %v1635
    %v1638 = vrot.slane %v1627, 5
    %v1639 = vsel %vm722, %v1638, %v1637
    %v1640 = vrot.slane %v1628, 4
    %v1641 = vsel %vm724, %v1640, %v1639
    %v1643 = vsel %vm510, %v1641, 0.0
    %1644 = vadd.xlane.f32.xlu0 %v1643
    %v1645 = vpop.xlane.xlu0 %1644
    %v1646 = vmul.f32 %v1645, 0.03125
    %v1647 = vmul.f32 %v1624, %v1624
    %v1648 = vmul.f32 %v1625, %v1625
    %v1649 = vmul.f32 %v1626, %v1626
    %v1650 = vmul.f32 %v1627, %v1627
    %v1651 = vmul.f32 %v1628, %v1628
    %v1657 = vrot.slane %v1648, 7
    %v1658 = vsel %vm718, %v1657, %v1647
    %v1659 = vrot.slane %v1649, 6
    %v1660 = vsel %vm720, %v1659, %v1658
    %v1661 = vrot.slane %v1650, 5
    %v1662 = vsel %vm722, %v1661, %v1660
    %v1663 = vrot.slane %v1651, 4
    %v1664 = vsel %vm724, %v1663, %v1662
    %v1666 = vsel %vm510, %v1664, 0.0
    %1667 = vadd.xlane.f32.xlu0 %v1666
    %v1668 = vpop.xlane.xlu0 %1667
    %v1669 = vmul.f32 %v1668, 0.03125
    %v1670 = vmul.f32 %v1646, %v1646
    %v1671 = vsub.f32 %v1669, %v1670
    %v1672 = vmax.f32 %v1671, 0.0
    %v1674 = vrot.slane %v1646, 1
    %v1675 = vrot.slane %v1646, 2
    %v1676 = vrot.slane %v1646, 3
    %v1677 = vrot.slane %v1646, 4
    %v1683 = vsub.f32 %v1624, %v1646
    %v1684 = vsub.f32 %v1625, %v1674
    %v1685 = vsub.f32 %v1626, %v1675
    %v1686 = vsub.f32 %v1627, %v1676
    %v1687 = vsub.f32 %v1628, %v1677
    %v1688 = vadd.f32 %v1672, 1e-12
    %v1689 = vrsqrt.pop %v1688
    %v1691 = vrot.slane %v1689, 1
    %v1692 = vrot.slane %v1689, 2
    %v1693 = vrot.slane %v1689, 3
    %v1694 = vrot.slane %v1689, 4
    %v1700 = vmul.f32 %v1683, %v1689
    %v1701 = vmul.f32 %v1684, %v1691
    %v1702 = vmul.f32 %v1685, %v1692
    %v1703 = vmul.f32 %v1686, %v1693
    %v1704 = vmul.f32 %v1687, %v1694
    %v1705 = vmul.f32 %v1700, %v1052
    %v1706 = vmul.f32 %v1701, %v1052
    %v1707 = vmul.f32 %v1702, %v1052
    %v1708 = vmul.f32 %v1703, %v1052
    %v1709 = vmul.f32 %v1704, %v1052
    %v1710 = vadd.f32 %v1705, %v1058
    %v1711 = vadd.f32 %v1706, %v1058
    %v1712 = vadd.f32 %v1707, %v1058
    %v1713 = vadd.f32 %v1708, %v1058
    %v1714 = vadd.f32 %v1709, %v1058
    %v1720 = vrot.slane %v1711, 7
    %v1721 = vsel %vm718, %v1720, %v1710
    %v1722 = vrot.slane %v1712, 6
    %v1723 = vsel %vm720, %v1722, %v1721
    %v1724 = vrot.slane %v1713, 5
    %v1725 = vsel %vm722, %v1724, %v1723
    %v1726 = vrot.slane %v1714, 4
    %v1727 = vsel %vm724, %v1726, %v1725
    %v1729 = vsel %vm510, %v1727, 0.0
    %v1730 = vrot.slane %v1729, 4
    %v1731 = vadd.f32 %v1729, %v1730
    %v1732 = vrot.slane %v1731, 2
    %v1733 = vadd.f32 %v1731, %v1732
    %v1734 = vrot.slane %v1733, 1
    %v1735 = vadd.f32 %v1733, %v1734
    %v1736 = vmul.f32 %v1735, 0.2
    %v1737 = vmul.f32 %v1700, %v1106
    %v1738 = vmul.f32 %v1701, %v1106
    %v1739 = vmul.f32 %v1702, %v1106
    %v1740 = vmul.f32 %v1703, %v1106
    %v1741 = vmul.f32 %v1704, %v1106
    %v1742 = vadd.f32 %v1737, %v1112
    %v1743 = vadd.f32 %v1738, %v1112
    %v1744 = vadd.f32 %v1739, %v1112
    %v1745 = vadd.f32 %v1740, %v1112
    %v1746 = vadd.f32 %v1741, %v1112
    %v1747 = vmul.f32 %v1742, %v1131
    %v1748 = vmul.f32 %v1743, %v1423
    %v1749 = vmul.f32 %v1744, %v1424
    %v1750 = vmul.f32 %v1745, %v1425
    %v1751 = vmul.f32 %v1746, %v1426
    %v1757 = vrot.slane %v1748, 7
    %v1758 = vsel %vm718, %v1757, %v1747
    %v1759 = vrot.slane %v1749, 6
    %v1760 = vsel %vm720, %v1759, %v1758
    %v1761 = vrot.slane %v1750, 5
    %v1762 = vsel %vm722, %v1761, %v1760
    %v1763 = vrot.slane %v1751, 4
    %v1764 = vsel %vm724, %v1763, %v1762
    %v1766 = vsel %vm510, %v1764, 0.0
    %v1767 = vrot.slane %v1766, 4
    %v1768 = vadd.f32 %v1766, %v1767
    %v1769 = vrot.slane %v1768, 2
    %v1770 = vadd.f32 %v1768, %v1769
    %v1771 = vrot.slane %v1770, 1
    %v1772 = vadd.f32 %v1770, %v1771
    %v1773 = vmul.f32 %v1772, 0.25
    %v1775 = vrot.slane %v1736, 7
    %vm1777 = vcmask 1040384
    %v1778 = vsel %vm1777, %v1411, %v1775
    %v1780 = vrot.slane %v1773, 7
    %v1782 = vsel %vm1777, %v1458, %v1780
    %1783 = vrot.lane.b32.xlu0 %v1778, 32
    %v1784 = vpop.permute.xlu0 %1783
    %v1786 = vrot.slane %v1784, 1
    %v1789 = vadd.f32 %v1073, %v1784
    %v1790 = vadd.f32 %v1074, %v1786
    %1791 = vrot.lane.b32.xlu0 %v1782, 32
    %v1792 = vpop.permute.xlu0 %1791
    %v1794 = vrot.slane %v1792, 1
    %v1797 = vadd.f32 %v1127, %v1792
    %v1798 = vadd.f32 %v1128, %v1794
    %s1799 = scalar_lea.vmem [#allocation4], 128
    %v1800 = vld [vmem:[%s1799] sm:$0xff]
    %v1801 = vld [vmem:[%s1799 + $0x8] sm:$0xff]
    %v1802 = vld [vmem:[%s1799 + $0x10] sm:$0xff]
    %v1803 = vld [vmem:[%s1799 + $0x18] sm:$0xff]
    %v1804 = vld [vmem:[%s1799 + $0x20] sm:$0xff]
    %v1805 = vld [vmem:[%s1799 + $0x28] sm:$0xff]
    %v1806 = vld [vmem:[%s1799 + $0x30] sm:$0xff]
    %v1807 = vld [vmem:[%s1799 + $0x38] sm:$0xff]
    %v1808 = vld [vmem:[%s1799 + $0x40] sm:$0xff]
    %v1809 = vld [vmem:[%s1799 + $0x48] sm:$0xff]
    %v1810 = vld [vmem:[%s1799 + $0x50] sm:$0xff]
    %v1811 = vld [vmem:[%s1799 + $0x58] sm:$0xff]
    %v1812 = vld [vmem:[%s1799 + $0x60] sm:$0xff]
    %v1813 = vld [vmem:[%s1799 + $0x68] sm:$0xff]
    %v1814 = vld [vmem:[%s1799 + $0x70] sm:$0xff]
    %v1815 = vld [vmem:[%s1799 + $0x78] sm:$0xff]
    %v1816 = vld [vmem:[%s4 + $0x5] sm:$0x1]
    %v1817 = vlaneseq
    %v1818 = vshrl.u32 %v1817, 7
    %v1819 = vsub.s32 0, %v1818
    %v1820 = vrot.slane %v1816, %v1819
    %v1823 = vrot.slane %v1790, 7
    %v1824 = vsel %vm718, %v1823, %v1789
    %1826 = vmatprep.subr.mxu0 0.0
    %1827 = vmatpush1.msra.mxu0 %v1800
    %1828 = vmatprep.subr.mxu0 0.0
    %1829 = vmatpush1.msra.mxu0 %v1801
    %1830 = vmatprep.subr.mxu0 0.0
    %1831 = vmatpush1.msra.mxu0 %v1802
    %1832 = vmatprep.subr.mxu0 0.0
    %1833 = vmatpush1.msra.mxu0 %v1803
    %1834 = vmatprep.subr.mxu0 0.0
    %1835 = vmatpush1.msra.mxu0 %v1804
    %1836 = vmatprep.subr.mxu0 0.0
    %1837 = vmatpush1.msra.mxu0 %v1805
    %1838 = vmatprep.subr.mxu0 0.0
    %1839 = vmatpush1.msra.mxu0 %v1806
    %1840 = vmatprep.subr.mxu0 0.0
    %1841 = vmatpush1.msra.mxu0 %v1807
    %1842 = vmatprep.subr.mxu0 0.0
    %1843 = vmatpush1.msra.mxu0 %v1808
    %1844 = vmatprep.subr.mxu0 0.0
    %1845 = vmatpush1.msra.mxu0 %v1809
    %1846 = vmatprep.subr.mxu0 0.0
    %1847 = vmatpush1.msra.mxu0 %v1810
    %1848 = vmatprep.subr.mxu0 0.0
    %1849 = vmatpush1.msra.mxu0 %v1811
    %1850 = vmatprep.subr.mxu0 0.0
    %1851 = vmatpush1.msra.mxu0 %v1812
    %1852 = vmatprep.subr.mxu0 0.0
    %1853 = vmatpush1.msra.mxu0 %v1813
    %1854 = vmatprep.subr.mxu0 0.0
    %1855 = vmatpush1.msra.mxu0 %v1814
    %1856 = vmatprep.subr.mxu0 0.0
    %1857 = vmatpush1.msra.mxu0 %v1815
    %1858 = vmatprep.subr.mxu0 0.0
    %1859 = vmatpush1.msra.mxu0 0.0
    %1860 = vmatprep.subr.mxu0 0.0
    %1861 = vmatpush1.msra.mxu0 0.0
    %1862 = vmatprep.subr.mxu0 0.0
    %1863 = vmatpush1.msra.mxu0 0.0
    %1864 = vmatprep.subr.mxu0 0.0
    %1865 = vmatpush1.msra.mxu0 0.0
    %1866 = vmatprep.subr.mxu0 0.0
    %1867 = vmatpush1.msra.mxu0 0.0
    %1868 = vmatprep.subr.mxu0 0.0
    %1869 = vmatpush1.msra.mxu0 0.0
    %1870 = vmatprep.subr.mxu0 0.0
    %1871 = vmatpush1.msra.mxu0 0.0
    %1872 = vmatprep.subr.mxu0 0.0
    %1873 = vmatpush1.msra.mxu0 0.0
    %1874 = vmatprep.subr.mxu0 0.0
    %1875 = vmatpush1.msra.mxu0 0.0
    %1876 = vmatprep.subr.mxu0 0.0
    %1877 = vmatpush1.msra.mxu0 0.0
    %1878 = vmatprep.subr.mxu0 0.0
    %1879 = vmatpush1.msra.mxu0 0.0
    %1880 = vmatprep.subr.mxu0 0.0
    %1881 = vmatpush1.msra.mxu0 0.0
    %1882 = vmatprep.subr.mxu0 0.0
    %1883 = vmatpush1.msra.mxu0 0.0
    %1884 = vmatprep.subr.mxu0 0.0
    %1885 = vmatpush1.msra.mxu0 0.0
    %1886 = vmatprep.subr.mxu0 0.0
    %1887 = vmatpush1.msra.mxu0 0.0
    %1888 = vmatprep.subr.mxu0 0.0
    %1889 = vmatpush1.msra.mxu0 0.0
    %1890 = vmatprep.mubr.f32.mxu0 0.0
    %1891 = vmatmul.mubr.f32.gmra.mrb[0].mxu0 %v1824
    %v1892 = vpop.f32.mrb[0].mxu0
    %v1893 = vadd.f32 %v1820, %v1892
    %v1894 = vpop.f32.mrb[0].mxu0
    %1895 = vdwg.mxu0
    %v1896 = vmax.f32 %v1893, 0.0
    %s1897 = scalar_lea.vmem [#allocation4], 256
    %v1898 = vld [vmem:[%s1897] sm:$0xff]
    %v1899 = vld [vmem:[%s1897 + $0x8] sm:$0xff]
    %v1900 = vld [vmem:[%s1897 + $0x10] sm:$0xff]
    %v1901 = vld [vmem:[%s1897 + $0x18] sm:$0xff]
    %v1902 = vld [vmem:[%s1897 + $0x20] sm:$0xff]
    %v1903 = vld [vmem:[%s1897 + $0x28] sm:$0xff]
    %v1904 = vld [vmem:[%s1897 + $0x30] sm:$0xff]
    %v1905 = vld [vmem:[%s1897 + $0x38] sm:$0xff]
    %v1906 = vld [vmem:[%s1897 + $0x40] sm:$0xff]
    %v1907 = vld [vmem:[%s1897 + $0x48] sm:$0xff]
    %v1908 = vld [vmem:[%s1897 + $0x50] sm:$0xff]
    %v1909 = vld [vmem:[%s1897 + $0x58] sm:$0xff]
    %v1910 = vld [vmem:[%s1897 + $0x60] sm:$0xff]
    %v1911 = vld [vmem:[%s1897 + $0x68] sm:$0xff]
    %v1912 = vld [vmem:[%s1897 + $0x70] sm:$0xff]
    %v1913 = vld [vmem:[%s1897 + $0x78] sm:$0xff]
    %v1914 = vld [vmem:[%s4 + $0x6] sm:$0x1]
    %v1915 = vlaneseq
    %v1916 = vshrl.u32 %v1915, 7
    %v1917 = vsub.s32 0, %v1916
    %v1918 = vrot.slane %v1914, %v1917
    %1919 = vmatprep.subr.mxu0 0.0
    %1920 = vmatpush1.msra.mxu0 %v1898
    %1921 = vmatprep.subr.mxu0 0.0
    %1922 = vmatpush1.msra.mxu0 %v1899
    %1923 = vmatprep.subr.mxu0 0.0
    %1924 = vmatpush1.msra.mxu0 %v1900
    %1925 = vmatprep.subr.mxu0 0.0
    %1926 = vmatpush1.msra.mxu0 %v1901
    %1927 = vmatprep.subr.mxu0 0.0
    %1928 = vmatpush1.msra.mxu0 %v1902
    %1929 = vmatprep.subr.mxu0 0.0
    %1930 = vmatpush1.msra.mxu0 %v1903
    %1931 = vmatprep.subr.mxu0 0.0
    %1932 = vmatpush1.msra.mxu0 %v1904
    %1933 = vmatprep.subr.mxu0 0.0
    %1934 = vmatpush1.msra.mxu0 %v1905
    %1935 = vmatprep.subr.mxu0 0.0
    %1936 = vmatpush1.msra.mxu0 %v1906
    %1937 = vmatprep.subr.mxu0 0.0
    %1938 = vmatpush1.msra.mxu0 %v1907
    %1939 = vmatprep.subr.mxu0 0.0
    %1940 = vmatpush1.msra.mxu0 %v1908
    %1941 = vmatprep.subr.mxu0 0.0
    %1942 = vmatpush1.msra.mxu0 %v1909
    %1943 = vmatprep.subr.mxu0 0.0
    %1944 = vmatpush1.msra.mxu0 %v1910
    %1945 = vmatprep.subr.mxu0 0.0
    %1946 = vmatpush1.msra.mxu0 %v1911
    %1947 = vmatprep.subr.mxu0 0.0
    %1948 = vmatpush1.msra.mxu0 %v1912
    %1949 = vmatprep.subr.mxu0 0.0
    %1950 = vmatpush1.msra.mxu0 %v1913
    %1951 = vmatprep.subr.mxu0 0.0
    %1952 = vmatpush1.msra.mxu0 0.0
    %1953 = vmatprep.subr.mxu0 0.0
    %1954 = vmatpush1.msra.mxu0 0.0
    %1955 = vmatprep.subr.mxu0 0.0
    %1956 = vmatpush1.msra.mxu0 0.0
    %1957 = vmatprep.subr.mxu0 0.0
    %1958 = vmatpush1.msra.mxu0 0.0
    %1959 = vmatprep.subr.mxu0 0.0
    %1960 = vmatpush1.msra.mxu0 0.0
    %1961 = vmatprep.subr.mxu0 0.0
    %1962 = vmatpush1.msra.mxu0 0.0
    %1963 = vmatprep.subr.mxu0 0.0
    %1964 = vmatpush1.msra.mxu0 0.0
    %1965 = vmatprep.subr.mxu0 0.0
    %1966 = vmatpush1.msra.mxu0 0.0
    %1967 = vmatprep.subr.mxu0 0.0
    %1968 = vmatpush1.msra.mxu0 0.0
    %1969 = vmatprep.subr.mxu0 0.0
    %1970 = vmatpush1.msra.mxu0 0.0
    %1971 = vmatprep.subr.mxu0 0.0
    %1972 = vmatpush1.msra.mxu0 0.0
    %1973 = vmatprep.subr.mxu0 0.0
    %1974 = vmatpush1.msra.mxu0 0.0
    %1975 = vmatprep.subr.mxu0 0.0
    %1976 = vmatpush1.msra.mxu0 0.0
    %1977 = vmatprep.subr.mxu0 0.0
    %1978 = vmatpush1.msra.mxu0 0.0
    %1979 = vmatprep.subr.mxu0 0.0
    %1980 = vmatpush1.msra.mxu0 0.0
    %1981 = vmatprep.subr.mxu0 0.0
    %1982 = vmatpush1.msra.mxu0 0.0
    %1983 = vmatprep.mubr.f32.mxu0 0.0
    %1984 = vmatmul.mubr.f32.gmra.mrb[0].mxu0 %v1896
    %v1985 = vpop.f32.mrb[0].mxu0
    %v1986 = vadd.f32 %v1918, %v1985
    %v1987 = vpop.f32.mrb[0].mxu0
    %1988 = vdwg.mxu0
    %1989 = vst [vmem:[%s5] sm:$0x3] %v1986
    %s1990 = scalar_lea.vmem [#allocation4], 384
    %v1991 = vld [vmem:[%s1990] sm:$0xff]
    %v1992 = vld [vmem:[%s1990 + $0x8] sm:$0xff]
    %v1993 = vld [vmem:[%s1990 + $0x10] sm:$0xff]
    %v1994 = vld [vmem:[%s1990 + $0x18] sm:$0xff]
    %v1995 = vld [vmem:[%s1990 + $0x20] sm:$0xff]
    %v1996 = vld [vmem:[%s1990 + $0x28] sm:$0xff]
    %v1997 = vld [vmem:[%s1990 + $0x30] sm:$0xff]
    %v1998 = vld [vmem:[%s1990 + $0x38] sm:$0xff]
    %v1999 = vld [vmem:[%s1990 + $0x40] sm:$0xff]
    %v2000 = vld [vmem:[%s1990 + $0x48] sm:$0xff]
    %v2001 = vld [vmem:[%s1990 + $0x50] sm:$0xff]
    %v2002 = vld [vmem:[%s1990 + $0x58] sm:$0xff]
    %v2003 = vld [vmem:[%s1990 + $0x60] sm:$0xff]
    %v2004 = vld [vmem:[%s1990 + $0x68] sm:$0xff]
    %v2005 = vld [vmem:[%s1990 + $0x70] sm:$0xff]
    %v2006 = vld [vmem:[%s1990 + $0x78] sm:$0xff]
    %v2007 = vld [vmem:[%s4 + $0x7] sm:$0x1]
    %v2008 = vlaneseq
    %v2009 = vshrl.u32 %v2008, 7
    %v2010 = vsub.s32 0, %v2009
    %v2011 = vrot.slane %v2007, %v2010
    %v2014 = vrot.slane %v1798, 7
    %v2015 = vsel %vm718, %v2014, %v1797
    %2017 = vmatprep.subr.mxu0 0.0
    %2018 = vmatpush1.msra.mxu0 %v1991
    %2019 = vmatprep.subr.mxu0 0.0
    %2020 = vmatpush1.msra.mxu0 %v1992
    %2021 = vmatprep.subr.mxu0 0.0
    %2022 = vmatpush1.msra.mxu0 %v1993
    %2023 = vmatprep.subr.mxu0 0.0
    %2024 = vmatpush1.msra.mxu0 %v1994
    %2025 = vmatprep.subr.mxu0 0.0
    %2026 = vmatpush1.msra.mxu0 %v1995
    %2027 = vmatprep.subr.mxu0 0.0
    %2028 = vmatpush1.msra.mxu0 %v1996
    %2029 = vmatprep.subr.mxu0 0.0
    %2030 = vmatpush1.msra.mxu0 %v1997
    %2031 = vmatprep.subr.mxu0 0.0
    %2032 = vmatpush1.msra.mxu0 %v1998
    %2033 = vmatprep.subr.mxu0 0.0
    %2034 = vmatpush1.msra.mxu0 %v1999
    %2035 = vmatprep.subr.mxu0 0.0
    %2036 = vmatpush1.msra.mxu0 %v2000
    %2037 = vmatprep.subr.mxu0 0.0
    %2038 = vmatpush1.msra.mxu0 %v2001
    %2039 = vmatprep.subr.mxu0 0.0
    %2040 = vmatpush1.msra.mxu0 %v2002
    %2041 = vmatprep.subr.mxu0 0.0
    %2042 = vmatpush1.msra.mxu0 %v2003
    %2043 = vmatprep.subr.mxu0 0.0
    %2044 = vmatpush1.msra.mxu0 %v2004
    %2045 = vmatprep.subr.mxu0 0.0
    %2046 = vmatpush1.msra.mxu0 %v2005
    %2047 = vmatprep.subr.mxu0 0.0
    %2048 = vmatpush1.msra.mxu0 %v2006
    %2049 = vmatprep.subr.mxu0 0.0
    %2050 = vmatpush1.msra.mxu0 0.0
    %2051 = vmatprep.subr.mxu0 0.0
    %2052 = vmatpush1.msra.mxu0 0.0
    %2053 = vmatprep.subr.mxu0 0.0
    %2054 = vmatpush1.msra.mxu0 0.0
    %2055 = vmatprep.subr.mxu0 0.0
    %2056 = vmatpush1.msra.mxu0 0.0
    %2057 = vmatprep.subr.mxu0 0.0
    %2058 = vmatpush1.msra.mxu0 0.0
    %2059 = vmatprep.subr.mxu0 0.0
    %2060 = vmatpush1.msra.mxu0 0.0
    %2061 = vmatprep.subr.mxu0 0.0
    %2062 = vmatpush1.msra.mxu0 0.0
    %2063 = vmatprep.subr.mxu0 0.0
    %2064 = vmatpush1.msra.mxu0 0.0
    %2065 = vmatprep.subr.mxu0 0.0
    %2066 = vmatpush1.msra.mxu0 0.0
    %2067 = vmatprep.subr.mxu0 0.0
    %2068 = vmatpush1.msra.mxu0 0.0
    %2069 = vmatprep.subr.mxu0 0.0
    %2070 = vmatpush1.msra.mxu0 0.0
    %2071 = vmatprep.subr.mxu0 0.0
    %2072 = vmatpush1.msra.mxu0 0.0
    %2073 = vmatprep.subr.mxu0 0.0
    %2074 = vmatpush1.msra.mxu0 0.0
    %2075 = vmatprep.subr.mxu0 0.0
    %2076 = vmatpush1.msra.mxu0 0.0
    %2077 = vmatprep.subr.mxu0 0.0
    %2078 = vmatpush1.msra.mxu0 0.0
    %2079 = vmatprep.subr.mxu0 0.0
    %2080 = vmatpush1.msra.mxu0 0.0
    %2081 = vmatprep.mubr.f32.mxu0 0.0
    %2082 = vmatmul.mubr.f32.gmra.mrb[0].mxu0 %v2015
    %v2083 = vpop.f32.mrb[0].mxu0
    %v2084 = vadd.f32 %v2011, %v2083
    %v2085 = vpop.f32.mrb[0].mxu0
    %2086 = vdwg.mxu0
    %s2087 = scalar_lea.vmem %s5, 2
    %2088 = vst [vmem:[%s2087] sm:$0x3] %v2084
    // Predicated region
    $region30: #{_forward_core.1} parent=1 // pred_check
      _
    $region31: #{_forward_core.1} parent=1 // pred_check_branch
      %2090 = sbr.rel (0) target = $region33
    $region32: #{_forward_core.1} parent=1 // pred_region
      _
    $region33: #{_forward_core.1} parent=1 // pred_fallthru
      _
    // Predicated region
    $region34: #{_forward_core.1} parent=1 // pred_check
      _
    $region35: #{_forward_core.1} parent=1 // pred_check_branch
      %2092 = sbr.rel (0) target = $region37
    $region36: #{_forward_core.1} parent=1 // pred_region
      _
    $region37: #{_forward_core.1} parent=1 // pred_fallthru
      _
    %2093 = vsyncpa [#allocation3], 1
    %2094 = vsyncpa [#allocation5], 1

</llo_original>
